<compile_context>
chip_gen: v5e
topology: v5e:2x2
jax: 0.10.0
libtpu: 0.0.40
codegen_flags: <defaults>
</compile_context>

<pallas_src>
import functools

import jax
import jax.numpy as jnp
from jax import lax
from jax.experimental import pallas as pl
from jax.experimental.pallas import tpu as pltpu

_LANE = 128
# Padded gate slot k takes PyTorch gate (i, f, g, o)[_GATE_PERM[k]]  ->  layout
# becomes (i, f, o, g): sigmoid covers the first 3*Hp lanes, tanh the last Hp.
_GATE_PERM = (0, 1, 3, 2)


# -----------------------------------------------------------------------------
# Kernel
# -----------------------------------------------------------------------------
def lstm_fc_kernel(emb_ref, wih_ref, whh_ref, b_ref, wfc_ref, bfc_ref,
                   out_ref, h_ref, c_ref, xproj_ref, *, seq_len, t_chunk):
    """Grid = (batch_splits, n_t_chunks); one step = one T-chunk of one batch
    slice.

    emb_ref  : (t_chunk, Bb, E)      time-major embedded chunk (MXU dtype)
    wih_ref  : (E, 4*Hp)             W_ih^T, gate order (i,f,o,g), H lane-padded
    whh_ref  : (Hp, 4*Hp)            W_hh^T
    b_ref    : (1, 4*Hp)   f32       b_ih + b_hh
    wfc_ref  : (Hp, Op)              fc weight^T
    bfc_ref  : (1, Op)     f32       fc bias
    out_ref  : (Bb, Op)    f32       logits (written on the last T step only)
    h_ref,c_ref : (Bb, Hp) f32       carries, persist across grid steps
    xproj_ref: (t_chunk, Bb, 4*Hp) f32  hoisted input projection (VMEM)
    """
    Bb = emb_ref.shape[1]
    E = emb_ref.shape[2]
    Hp = whh_ref.shape[0]
    mxu_dtype = whh_ref.dtype

    ti = pl.program_id(1)                # T-chunk index ('arbitrary' axis)

    @pl.when(ti == 0)
    def _init():
        h_ref[...] = jnp.zeros_like(h_ref)
        c_ref[...] = jnp.zeros_like(c_ref)

    # Hoisted input projection: one (t_chunk*Bb, E) x (E, 4Hp) MXU matmul per
    # chunk, stored to VMEM scratch so the serial loop only streams one
    # (Bb, 4Hp) slab per step (bounded vreg live range).
    x_chunk = emb_ref[...].reshape(t_chunk * Bb, E)
    xproj_ref[...] = (
        jnp.dot(x_chunk, wih_ref[...], preferred_element_type=jnp.float32)
        + b_ref[...]
    ).reshape(t_chunk, Bb, 4 * Hp)

    t0 = ti * t_chunk

    def step(t, carry):
        h, c = carry
        gates = xproj_ref[t] + jnp.dot(
            h.astype(mxu_dtype), whh_ref[...],
            preferred_element_type=jnp.float32)            # (Bb, 4Hp) f32
        # Gate layout (i, f, o, g): one wide sigmoid + one tanh slab.
        sig = jax.nn.sigmoid(gates[:, :3 * Hp])
        i_g = sig[:, 0 * Hp:1 * Hp]
        f_g = sig[:, 1 * Hp:2 * Hp]
        o_g = sig[:, 2 * Hp:3 * Hp]
        g_g = jnp.tanh(gates[:, 3 * Hp:4 * Hp])
        c_new = f_g * c + i_g * g_g
        h_new = o_g * jnp.tanh(c_new)
        # Ragged-T tail: mask steps past the real sequence length (a
        # zero-embedded step would still move h/c, so masking is required).
        valid = (t0 + t) < seq_len
        return (jnp.where(valid, h_new, h), jnp.where(valid, c_new, c))

    h, c = lax.fori_loop(0, t_chunk, step, (h_ref[...], c_ref[...]),
                         unroll=True)
    h_ref[...] = h
    c_ref[...] = c

    # Final Linear on the last hidden state: lane-dense (Bb, Op) store.
    @pl.when(ti == pl.num_programs(1) - 1)
    def _final():
        out_ref[...] = (
            jnp.dot(h.astype(wfc_ref.dtype), wfc_ref[...],
                    preferred_element_type=jnp.float32) + bfc_ref[...])


# -----------------------------------------------------------------------------
# Wrapper helpers
# -----------------------------------------------------------------------------
def _round_up(x, m):
    return ((x + m - 1) // m) * m


def _pad_gate_matrix(w, rows_out, H, Hp, dtype):
    """w: (rows, 4H) in PyTorch gate order (i,f,g,o) -> (rows_out, 4*Hp) in the
    padded kernel order (i,f,o,g).  Zero padding keeps padded hidden lanes
    exactly inert through the recurrence."""
    rows = w.shape[0]
    out = jnp.zeros((rows_out, 4 * Hp), jnp.float32)
    for k, src in enumerate(_GATE_PERM):
        out = out.at[:rows, k * Hp:k * Hp + H].set(w[:, src * H:(src + 1) * H])
    return out.astype(dtype)


def _const_spec(block_shape, index_map):
    """Constant-index operand: single-buffer it (default double-buffering of an
    index_map-invariant block just wastes VMEM)."""
    try:
        return pl.BlockSpec(block_shape, index_map,
                            pipeline_mode=pl.Buffered(1))
    except (AttributeError, TypeError):      # older jax without pipeline_mode
        return pl.BlockSpec(block_shape, index_map)


def _choose_t_chunk(T, Bb, E, Hp, Op, emb_bytes, max_t_chunk,
                    budget_bytes=40 << 20):
    """Largest T-chunk whose per-step VMEM footprint (double-buffered emb block
    + f32 xproj scratch + weights) fits the budget.  Grid-step overhead is
    ~0.35us so bigger is better; tails are masked so t_chunk need not divide
    T."""
    fixed = (E * 4 * Hp + Hp * 4 * Hp + Hp * Op) * emb_bytes   # weights (1-buf)
    fixed += (4 * Hp + Op) * 4                                  # biases
    fixed += 2 * Bb * Hp * 4 + 2 * Bb * Op * 4                  # h, c, out
    per_t = Bb * (2 * E * emb_bytes + 4 * Hp * 4)               # emb(2x)+xproj
    t = (budget_bytes - fixed) // per_t
    return int(max(1, min(max_t_chunk, T, t)))


# -----------------------------------------------------------------------------
# Forward
# -----------------------------------------------------------------------------
@functools.partial(
    jax.jit, static_argnames=("mxu_dtype", "batch_splits", "max_t_chunk"))
def sentiment_forward(x_ids, params, *, mxu_dtype=jnp.float32,
                      batch_splits=1, max_t_chunk=32):
    """x_ids: (B, T) int32 token ids -> (B, output_dim) f32 logits.

    mxu_dtype=jnp.bfloat16 casts only the MXU operands (embeddings + weights);
    accumulation and gate/cell math stay f32 (recommended on v6e/v7x, safe on
    v5e).  batch_splits=2 adds a leading 'parallel' batch axis for v7x's two
    TensorCores.

    NOTE: T is strictly serial, so the only way to fill the MXU M dimension of
    the per-timestep h @ W_hh matmul is batch: aim for B >= 128 (v5e,
    128x128 MXU) / B >= 256 per core (v6e/v7x, 256x256 MXU) for throughput.
    """
    B, T = x_ids.shape
    E = params["embedding"].shape[1]
    H = params["w_hh"].shape[1]
    O = params["fc_w"].shape[0]

    Hp = _round_up(H, _LANE)
    Op = _round_up(O, _LANE)

    mxu_dtype = jnp.dtype(mxu_dtype)
    emb_bytes = mxu_dtype.itemsize
    sublane = 16 if emb_bytes == 2 else 8          # packed-dtype sublane granule
    nb = max(1, int(batch_splits))
    Bp = _round_up(B, sublane * nb)
    Bb = Bp // nb                                  # batch rows per grid slice

    t_chunk = _choose_t_chunk(T, Bb, E, Hp, Op, emb_bytes, max_t_chunk)
    n_chunks = -(-T // t_chunk)
    T_pad = n_chunks * t_chunk

    # Pad the *ids* (cheap int32) instead of the embedded activation, then one
    # fused time-major gather.  E is NOT lane-padded, so the streamed
    # activation is (T_pad, Bp, E) in the MXU dtype -- minimal HBM round trip
    # short of fusing the gather into the kernel.
    ids = jnp.zeros((Bp, T_pad), x_ids.dtype).at[:B, :T].set(x_ids)
    emb = jnp.take(params["embedding"].astype(mxu_dtype), ids.T, axis=0)

    wih_p = _pad_gate_matrix(params["w_ih"].T, E, H, Hp, mxu_dtype)
    whh_p = _pad_gate_matrix(params["w_hh"].T, Hp, H, Hp, mxu_dtype)
    bias_p = _pad_gate_matrix(
        (params["b_ih"] + params["b_hh"]).reshape(1, -1), 1, H, Hp, jnp.float32)
    wfc_p = (jnp.zeros((Hp, Op), jnp.float32)
             .at[:H, :O].set(params["fc_w"].T).astype(mxu_dtype))
    bfc_p = jnp.zeros((1, Op), jnp.float32).at[:, :O].set(params["fc_b"][None])

    grid_spec = pltpu.PrefetchScalarGridSpec(
        num_scalar_prefetch=0,
        grid=(nb, n_chunks),
        in_specs=[
            pl.BlockSpec((t_chunk, Bb, E), lambda b, t: (t, b, 0)),  # streamed
            _const_spec((E, 4 * Hp), lambda b, t: (0, 0)),
            _const_spec((Hp, 4 * Hp), lambda b, t: (0, 0)),
            _const_spec((1, 4 * Hp), lambda b, t: (0, 0)),
            _const_spec((Hp, Op), lambda b, t: (0, 0)),
            _const_spec((1, Op), lambda b, t: (0, 0)),
        ],
        out_specs=pl.BlockSpec((Bb, Op), lambda b, t: (b, 0)),
        scratch_shapes=[
            pltpu.VMEM((Bb, Hp), jnp.float32),                # h carry
            pltpu.VMEM((Bb, Hp), jnp.float32),                # c carry
            pltpu.VMEM((t_chunk, Bb, 4 * Hp), jnp.float32),   # xproj
        ],
    )

    # Generation-aware VMEM cap: real footprint x2 headroom, never the full
    # 64 MiB of a v7x TensorCore (fine on v5e/v6e's 128 MiB too).
    footprint = (2 * t_chunk * Bb * E * emb_bytes
                 + t_chunk * Bb * 4 * Hp * 4
                 + (E * 4 * Hp + Hp * 4 * Hp + Hp * Op) * emb_bytes
                 + (4 * Hp + Op) * 4
                 + 2 * Bb * Hp * 4 + 2 * Bb * Op * 4)
    vmem_limit = int(min(48 << 20, max(2 * footprint + (4 << 20), 16 << 20)))

    out_padded = pl.pallas_call(
        functools.partial(lstm_fc_kernel, seq_len=T, t_chunk=t_chunk),
        out_shape=jax.ShapeDtypeStruct((Bp, Op), jnp.float32),
        grid_spec=grid_spec,
        compiler_params=pltpu.CompilerParams(
            # Batch rows are independent ('parallel', shards across TCs);
            # the T recurrence is strictly serial ('arbitrary').
            dimension_semantics=("parallel", "arbitrary"),
            vmem_limit_bytes=vmem_limit,
        ),
    )(emb, wih_p, whh_p, bias_p, wfc_p, bfc_p)

    return out_padded[:B, :O]


# -----------------------------------------------------------------------------
# Params + pure-JAX reference (matches the PyTorch forward)
# -----------------------------------------------------------------------------
def init_params(key, vocab_size, embedding_dim, hidden_dim, output_dim):
    ks = jax.random.split(key, 7)
    s_h = 1.0 / jnp.sqrt(hidden_dim)
    return {
        "embedding": jax.random.normal(ks[0], (vocab_size, embedding_dim), jnp.float32),
        # PyTorch LSTM weight shapes: weight_ih (4H, E), weight_hh (4H, H)
        "w_ih": jax.random.uniform(ks[1], (4 * hidden_dim, embedding_dim), jnp.float32, -s_h, s_h),
        "w_hh": jax.random.uniform(ks[2], (4 * hidden_dim, hidden_dim), jnp.float32, -s_h, s_h),
        "b_ih": jax.random.uniform(ks[3], (4 * hidden_dim,), jnp.float32, -s_h, s_h),
        "b_hh": jax.random.uniform(ks[4], (4 * hidden_dim,), jnp.float32, -s_h, s_h),
        # nn.Linear(hidden_dim, output_dim): weight (O, H), bias (O,)
        "fc_w": jax.random.uniform(ks[5], (output_dim, hidden_dim), jnp.float32, -s_h, s_h),
        "fc_b": jax.random.uniform(ks[6], (output_dim,), jnp.float32, -s_h, s_h),
    }


def _reference_forward(x_ids, params):
    emb = jnp.take(params["embedding"], x_ids, axis=0)   # (B, T, E)
    H = params["w_hh"].shape[1]
    B = x_ids.shape[0]
    wih_t, whh_t = params["w_ih"].T, params["w_hh"].T
    bias = params["b_ih"] + params["b_hh"]

    def step(carry, x_t):
        h, c = carry
        gates = x_t @ wih_t + h @ whh_t + bias
        i = jax.nn.sigmoid(gates[:, 0 * H:1 * H])
        f = jax.nn.sigmoid(gates[:, 1 * H:2 * H])
        g = jnp.tanh(gates[:, 2 * H:3 * H])
        o = jax.nn.sigmoid(gates[:, 3 * H:4 * H])
        c = f * c + i * g
        h = o * jnp.tanh(c)
        return (h, c), None

    (h_T, _), _ = jax.lax.scan(step,
                               (jnp.zeros((B, H)), jnp.zeros((B, H))),
                               jnp.transpose(emb, (1, 0, 2)))
    return h_T @ params["fc_w"].T + params["fc_b"]


if __name__ == "__main__":
    vocab_size, embedding_dim, hidden_dim, output_dim = 50, 32, 32, 2

    key = jax.random.PRNGKey(0)
    k_params, k_ids, k_ids2 = jax.random.split(key, 3)
    params = init_params(k_params, vocab_size, embedding_dim, hidden_dim, output_dim)

    # --- f32 path, strict check (batch=8, seq=8) ------------------------------
    x_ids = jax.random.randint(k_ids, (8, 8), 0, vocab_size, dtype=jnp.int32)
    out = jax.block_until_ready(sentiment_forward(x_ids, params))
    ref = _reference_forward(x_ids, params)
    assert out.shape == (8, output_dim)
    assert jnp.allclose(out, ref, atol=1e-4, rtol=1e-4), (
        f"f32 max abs err = {jnp.max(jnp.abs(out - ref))}")

    # --- bf16 MXU operands (v6e/v7x recipe), loose tolerance ------------------
    out_bf16 = jax.block_until_ready(
        sentiment_forward(x_ids, params, mxu_dtype=jnp.bfloat16))
    assert jnp.allclose(out_bf16, ref, atol=1e-1, rtol=1e-1), (
        f"bf16 max abs err = {jnp.max(jnp.abs(out_bf16 - ref))}")

    # --- ragged T (masked tail) + 2-way batch split (v7x dual-TC recipe) ------
    x_ids2 = jax.random.randint(k_ids2, (16, 11), 0, vocab_size, dtype=jnp.int32)
    out2 = jax.block_until_ready(
        sentiment_forward(x_ids2, params, batch_splits=2, max_t_chunk=4))
    ref2 = _reference_forward(x_ids2, params)
    assert jnp.allclose(out2, ref2, atol=1e-4, rtol=1e-4), (
        f"ragged/split max abs err = {jnp.max(jnp.abs(out2 - ref2))}")

    print("KERNEL_OK")
</pallas_src>

<mosaic_0001>
module attributes {stable_mosaic.version = 11 : i64} {
  func.func @lstm_fc_kernel(%arg0: i32, %arg1: i32, %arg2: memref<8x8x32xf32, #tpu.memory_space<vmem>>, %arg3: memref<32x512xf32, #tpu.memory_space<vmem>>, %arg4: memref<128x512xf32, #tpu.memory_space<vmem>>, %arg5: memref<1x512xf32, #tpu.memory_space<vmem>>, %arg6: memref<128x128xf32, #tpu.memory_space<vmem>>, %arg7: memref<1x128xf32, #tpu.memory_space<vmem>>, %arg8: memref<8x128xf32, #tpu.memory_space<vmem>>, %arg9: memref<8x128xf32, #tpu.memory_space<vmem>>, %arg10: memref<8x128xf32, #tpu.memory_space<vmem>>, %arg11: memref<8x8x512xf32, #tpu.memory_space<vmem>>) attributes {dimension_semantics = [#tpu.dimension_semantics<parallel>, #tpu.dimension_semantics<arbitrary>], iteration_bounds = array<i64: 1, 1>, scalar_prefetch = 0 : i64, scratch_operands = 3 : i64, tpu.core_type = #tpu.core_type<tc>, window_params = [{transform_indices = @transform_0, window_bounds = array<i64: 8, 8, 32>}, {pipeline_mode = #tpu.pipeline_mode<synchronous>, transform_indices = @transform_1, window_bounds = array<i64: 32, 512>}, {pipeline_mode = #tpu.pipeline_mode<synchronous>, transform_indices = @transform_2, window_bounds = array<i64: 128, 512>}, {pipeline_mode = #tpu.pipeline_mode<synchronous>, transform_indices = @transform_3, window_bounds = array<i64: 1, 512>}, {pipeline_mode = #tpu.pipeline_mode<synchronous>, transform_indices = @transform_4, window_bounds = array<i64: 128, 128>}, {pipeline_mode = #tpu.pipeline_mode<synchronous>, transform_indices = @transform_5, window_bounds = array<i64: 1, 128>}, {transform_indices = @transform_6, window_bounds = array<i64: 8, 128>}]} {
    %c0_i32 = arith.constant 0 : i32
    %0 = arith.cmpi eq, %arg1, %c0_i32 : i32
    %1 = arith.extui %0 : i1 to i32
    %c0_i32_0 = arith.constant 0 : i32
    %2 = arith.cmpi ne, %1, %c0_i32_0 : i32
    scf.if %2 {
      %cst_78 = arith.constant 0.000000e+00 : f32
      %228 = vector.broadcast %cst_78 : f32 to vector<8x128xf32>
      %c0_79 = arith.constant 0 : index
      %c0_80 = arith.constant 0 : index
      %229 = vector.load %arg9[%c0_79, %c0_80] : memref<8x128xf32, #tpu.memory_space<vmem>>, vector<8x128xf32>
      tpu.vector_store %arg9[%c0_79, %c0_80], %228 {strides = array<i32>} : memref<8x128xf32, #tpu.memory_space<vmem>>, vector<8x128xf32>,
      %cst_81 = arith.constant 0.000000e+00 : f32
      %230 = vector.broadcast %cst_81 : f32 to vector<8x128xf32>
      %c0_82 = arith.constant 0 : index
      %c0_83 = arith.constant 0 : index
      %231 = vector.load %arg10[%c0_82, %c0_83] : memref<8x128xf32, #tpu.memory_space<vmem>>, vector<8x128xf32>
      tpu.vector_store %arg10[%c0_82, %c0_83], %230 {strides = array<i32>} : memref<8x128xf32, #tpu.memory_space<vmem>>, vector<8x128xf32>,
    } else {
    }
    %c0 = arith.constant 0 : index
    %c0_1 = arith.constant 0 : index
    %c0_2 = arith.constant 0 : index
    %3 = vector.load %arg2[%c0, %c0_1, %c0_2] : memref<8x8x32xf32, #tpu.memory_space<vmem>>, vector<8x8x32xf32>
    %4 = vector.shape_cast %3 : vector<8x8x32xf32> to vector<64x32xf32>
    %c0_3 = arith.constant 0 : index
    %c0_4 = arith.constant 0 : index
    %5 = vector.load %arg3[%c0_3, %c0_4] : memref<32x512xf32, #tpu.memory_space<vmem>>, vector<32x512xf32>
    %cst = arith.constant dense<0.000000e+00> : vector<64x512xf32>
    %6 = tpu.matmul %4, %5, %cst {dimension_numbers = #tpu.dot_dimension_numbers<[1], [0], [0], [1], [0, 0, 1, 1], [], []>} : vector<64x32xf32>, vector<32x512xf32>, vector<64x512xf32> -> vector<64x512xf32>
    %c0_5 = arith.constant 0 : index
    %c0_6 = arith.constant 0 : index
    %7 = vector.load %arg5[%c0_5, %c0_6] : memref<1x512xf32, #tpu.memory_space<vmem>>, vector<1x512xf32>
    %8 = vector.broadcast %7 : vector<1x512xf32> to vector<64x512xf32>
    %9 = arith.addf %6, %8 : vector<64x512xf32>
    %10 = vector.shape_cast %9 : vector<64x512xf32> to vector<8x8x512xf32>
    %c0_7 = arith.constant 0 : index
    %c0_8 = arith.constant 0 : index
    %c0_9 = arith.constant 0 : index
    %11 = vector.load %arg11[%c0_7, %c0_8, %c0_9] : memref<8x8x512xf32, #tpu.memory_space<vmem>>, vector<8x8x512xf32>
    tpu.vector_store %arg11[%c0_7, %c0_8, %c0_9], %10 {strides = array<i32>} : memref<8x8x512xf32, #tpu.memory_space<vmem>>, vector<8x8x512xf32>,
    %c8_i32 = arith.constant 8 : i32
    %12 = arith.muli %arg1, %c8_i32 : i32
    %c0_10 = arith.constant 0 : index
    %c0_11 = arith.constant 0 : index
    %13 = vector.load %arg9[%c0_10, %c0_11] : memref<8x128xf32, #tpu.memory_space<vmem>>, vector<8x128xf32>
    %c0_12 = arith.constant 0 : index
    %c0_13 = arith.constant 0 : index
    %14 = vector.load %arg10[%c0_12, %c0_13] : memref<8x128xf32, #tpu.memory_space<vmem>>, vector<8x128xf32>
    %c0_i32_14 = arith.constant 0 : i32
    %15 = arith.index_cast %c0_i32_14 : i32 to index
    %c0_15 = arith.constant 0 : index
    %c0_16 = arith.constant 0 : index
    %16 = vector.load %arg11[%15, %c0_15, %c0_16] : memref<8x8x512xf32, #tpu.memory_space<vmem>>, vector<1x8x512xf32>
    %17 = vector.shape_cast %16 : vector<1x8x512xf32> to vector<8x512xf32>
    %c0_17 = arith.constant 0 : index
    %c0_18 = arith.constant 0 : index
    %18 = vector.load %arg4[%c0_17, %c0_18] : memref<128x512xf32, #tpu.memory_space<vmem>>, vector<128x512xf32>
    %cst_19 = arith.constant dense<0.000000e+00> : vector<8x512xf32>
    %19 = tpu.matmul %13, %18, %cst_19 {dimension_numbers = #tpu.dot_dimension_numbers<[1], [0], [0], [1], [0, 0, 1, 1], [], []>} : vector<8x128xf32>, vector<128x512xf32>, vector<8x512xf32> -> vector<8x512xf32>
    %20 = arith.addf %17, %19 : vector<8x512xf32>
    %21 = vector.extract_strided_slice %20 {offsets = [0, 0], sizes = [8, 384], strides = [1, 1]} : vector<8x512xf32> to vector<8x384xf32>
    %22 = arith.negf %21 : vector<8x384xf32>
    %23 = math.exp %22 : vector<8x384xf32>
    %cst_20 = arith.constant 1.000000e+00 : f32
    %24 = vector.broadcast %cst_20 : f32 to vector<8x384xf32>
    %25 = arith.addf %24, %23 : vector<8x384xf32>
    %26 = arith.divf %24, %25 : vector<8x384xf32>
    %27 = vector.extract_strided_slice %26 {offsets = [0, 0], sizes = [8, 128], strides = [1, 1]} : vector<8x384xf32> to vector<8x128xf32>
    %28 = vector.extract_strided_slice %26 {offsets = [0, 128], sizes = [8, 128], strides = [1, 1]} : vector<8x384xf32> to vector<8x128xf32>
    %29 = vector.extract_strided_slice %26 {offsets = [0, 256], sizes = [8, 128], strides = [1, 1]} : vector<8x384xf32> to vector<8x128xf32>
    %30 = vector.extract_strided_slice %20 {offsets = [0, 384], sizes = [8, 128], strides = [1, 1]} : vector<8x512xf32> to vector<8x128xf32>
    %31 = math.tanh %30 : vector<8x128xf32>
    %32 = arith.mulf %28, %14 : vector<8x128xf32>
    %33 = arith.mulf %27, %31 : vector<8x128xf32>
    %34 = arith.addf %32, %33 : vector<8x128xf32>
    %35 = math.tanh %34 : vector<8x128xf32>
    %36 = arith.mulf %29, %35 : vector<8x128xf32>
    %37 = arith.addi %12, %c0_i32_14 : i32
    %c8_i32_21 = arith.constant 8 : i32
    %38 = arith.cmpi slt, %37, %c8_i32_21 : i32
    %39 = arith.select %38, %36, %13 : vector<8x128xf32>
    %40 = arith.select %38, %34, %14 : vector<8x128xf32>
    %c1_i32 = arith.constant 1 : i32
    %41 = arith.index_cast %c1_i32 : i32 to index
    %c0_22 = arith.constant 0 : index
    %c0_23 = arith.constant 0 : index
    %42 = vector.load %arg11[%41, %c0_22, %c0_23] : memref<8x8x512xf32, #tpu.memory_space<vmem>>, vector<1x8x512xf32>
    %43 = vector.shape_cast %42 : vector<1x8x512xf32> to vector<8x512xf32>
    %c0_24 = arith.constant 0 : index
    %c0_25 = arith.constant 0 : index
    %44 = vector.load %arg4[%c0_24, %c0_25] : memref<128x512xf32, #tpu.memory_space<vmem>>, vector<128x512xf32>
    %cst_26 = arith.constant dense<0.000000e+00> : vector<8x512xf32>
    %45 = tpu.matmul %39, %44, %cst_26 {dimension_numbers = #tpu.dot_dimension_numbers<[1], [0], [0], [1], [0, 0, 1, 1], [], []>} : vector<8x128xf32>, vector<128x512xf32>, vector<8x512xf32> -> vector<8x512xf32>
    %46 = arith.addf %43, %45 : vector<8x512xf32>
    %47 = vector.extract_strided_slice %46 {offsets = [0, 0], sizes = [8, 384], strides = [1, 1]} : vector<8x512xf32> to vector<8x384xf32>
    %48 = arith.negf %47 : vector<8x384xf32>
    %49 = math.exp %48 : vector<8x384xf32>
    %cst_27 = arith.constant 1.000000e+00 : f32
    %50 = vector.broadcast %cst_27 : f32 to vector<8x384xf32>
    %51 = arith.addf %50, %49 : vector<8x384xf32>
    %52 = arith.divf %50, %51 : vector<8x384xf32>
    %53 = vector.extract_strided_slice %52 {offsets = [0, 0], sizes = [8, 128], strides = [1, 1]} : vector<8x384xf32> to vector<8x128xf32>
    %54 = vector.extract_strided_slice %52 {offsets = [0, 128], sizes = [8, 128], strides = [1, 1]} : vector<8x384xf32> to vector<8x128xf32>
    %55 = vector.extract_strided_slice %52 {offsets = [0, 256], sizes = [8, 128], strides = [1, 1]} : vector<8x384xf32> to vector<8x128xf32>
    %56 = vector.extract_strided_slice %46 {offsets = [0, 384], sizes = [8, 128], strides = [1, 1]} : vector<8x512xf32> to vector<8x128xf32>
    %57 = math.tanh %56 : vector<8x128xf32>
    %58 = arith.mulf %54, %40 : vector<8x128xf32>
    %59 = arith.mulf %53, %57 : vector<8x128xf32>
    %60 = arith.addf %58, %59 : vector<8x128xf32>
    %61 = math.tanh %60 : vector<8x128xf32>
    %62 = arith.mulf %55, %61 : vector<8x128xf32>
    %63 = arith.addi %12, %c1_i32 : i32
    %c8_i32_28 = arith.constant 8 : i32
    %64 = arith.cmpi slt, %63, %c8_i32_28 : i32
    %65 = arith.select %64, %62, %39 : vector<8x128xf32>
    %66 = arith.select %64, %60, %40 : vector<8x128xf32>
    %c2_i32 = arith.constant 2 : i32
    %67 = arith.index_cast %c2_i32 : i32 to index
    %c0_29 = arith.constant 0 : index
    %c0_30 = arith.constant 0 : index
    %68 = vector.load %arg11[%67, %c0_29, %c0_30] : memref<8x8x512xf32, #tpu.memory_space<vmem>>, vector<1x8x512xf32>
    %69 = vector.shape_cast %68 : vector<1x8x512xf32> to vector<8x512xf32>
    %c0_31 = arith.constant 0 : index
    %c0_32 = arith.constant 0 : index
    %70 = vector.load %arg4[%c0_31, %c0_32] : memref<128x512xf32, #tpu.memory_space<vmem>>, vector<128x512xf32>
    %cst_33 = arith.constant dense<0.000000e+00> : vector<8x512xf32>
    %71 = tpu.matmul %65, %70, %cst_33 {dimension_numbers = #tpu.dot_dimension_numbers<[1], [0], [0], [1], [0, 0, 1, 1], [], []>} : vector<8x128xf32>, vector<128x512xf32>, vector<8x512xf32> -> vector<8x512xf32>
    %72 = arith.addf %69, %71 : vector<8x512xf32>
    %73 = vector.extract_strided_slice %72 {offsets = [0, 0], sizes = [8, 384], strides = [1, 1]} : vector<8x512xf32> to vector<8x384xf32>
    %74 = arith.negf %73 : vector<8x384xf32>
    %75 = math.exp %74 : vector<8x384xf32>
    %cst_34 = arith.constant 1.000000e+00 : f32
    %76 = vector.broadcast %cst_34 : f32 to vector<8x384xf32>
    %77 = arith.addf %76, %75 : vector<8x384xf32>
    %78 = arith.divf %76, %77 : vector<8x384xf32>
    %79 = vector.extract_strided_slice %78 {offsets = [0, 0], sizes = [8, 128], strides = [1, 1]} : vector<8x384xf32> to vector<8x128xf32>
    %80 = vector.extract_strided_slice %78 {offsets = [0, 128], sizes = [8, 128], strides = [1, 1]} : vector<8x384xf32> to vector<8x128xf32>
    %81 = vector.extract_strided_slice %78 {offsets = [0, 256], sizes = [8, 128], strides = [1, 1]} : vector<8x384xf32> to vector<8x128xf32>
    %82 = vector.extract_strided_slice %72 {offsets = [0, 384], sizes = [8, 128], strides = [1, 1]} : vector<8x512xf32> to vector<8x128xf32>
    %83 = math.tanh %82 : vector<8x128xf32>
    %84 = arith.mulf %80, %66 : vector<8x128xf32>
    %85 = arith.mulf %79, %83 : vector<8x128xf32>
    %86 = arith.addf %84, %85 : vector<8x128xf32>
    %87 = math.tanh %86 : vector<8x128xf32>
    %88 = arith.mulf %81, %87 : vector<8x128xf32>
    %89 = arith.addi %12, %c2_i32 : i32
    %c8_i32_35 = arith.constant 8 : i32
    %90 = arith.cmpi slt, %89, %c8_i32_35 : i32
    %91 = arith.select %90, %88, %65 : vector<8x128xf32>
    %92 = arith.select %90, %86, %66 : vector<8x128xf32>
    %c3_i32 = arith.constant 3 : i32
    %93 = arith.index_cast %c3_i32 : i32 to index
    %c0_36 = arith.constant 0 : index
    %c0_37 = arith.constant 0 : index
    %94 = vector.load %arg11[%93, %c0_36, %c0_37] : memref<8x8x512xf32, #tpu.memory_space<vmem>>, vector<1x8x512xf32>
    %95 = vector.shape_cast %94 : vector<1x8x512xf32> to vector<8x512xf32>
    %c0_38 = arith.constant 0 : index
    %c0_39 = arith.constant 0 : index
    %96 = vector.load %arg4[%c0_38, %c0_39] : memref<128x512xf32, #tpu.memory_space<vmem>>, vector<128x512xf32>
    %cst_40 = arith.constant dense<0.000000e+00> : vector<8x512xf32>
    %97 = tpu.matmul %91, %96, %cst_40 {dimension_numbers = #tpu.dot_dimension_numbers<[1], [0], [0], [1], [0, 0, 1, 1], [], []>} : vector<8x128xf32>, vector<128x512xf32>, vector<8x512xf32> -> vector<8x512xf32>
    %98 = arith.addf %95, %97 : vector<8x512xf32>
    %99 = vector.extract_strided_slice %98 {offsets = [0, 0], sizes = [8, 384], strides = [1, 1]} : vector<8x512xf32> to vector<8x384xf32>
    %100 = arith.negf %99 : vector<8x384xf32>
    %101 = math.exp %100 : vector<8x384xf32>
    %cst_41 = arith.constant 1.000000e+00 : f32
    %102 = vector.broadcast %cst_41 : f32 to vector<8x384xf32>
    %103 = arith.addf %102, %101 : vector<8x384xf32>
    %104 = arith.divf %102, %103 : vector<8x384xf32>
    %105 = vector.extract_strided_slice %104 {offsets = [0, 0], sizes = [8, 128], strides = [1, 1]} : vector<8x384xf32> to vector<8x128xf32>
    %106 = vector.extract_strided_slice %104 {offsets = [0, 128], sizes = [8, 128], strides = [1, 1]} : vector<8x384xf32> to vector<8x128xf32>
    %107 = vector.extract_strided_slice %104 {offsets = [0, 256], sizes = [8, 128], strides = [1, 1]} : vector<8x384xf32> to vector<8x128xf32>
    %108 = vector.extract_strided_slice %98 {offsets = [0, 384], sizes = [8, 128], strides = [1, 1]} : vector<8x512xf32> to vector<8x128xf32>
    %109 = math.tanh %108 : vector<8x128xf32>
    %110 = arith.mulf %106, %92 : vector<8x128xf32>
    %111 = arith.mulf %105, %109 : vector<8x128xf32>
    %112 = arith.addf %110, %111 : vector<8x128xf32>
    %113 = math.tanh %112 : vector<8x128xf32>
    %114 = arith.mulf %107, %113 : vector<8x128xf32>
    %115 = arith.addi %12, %c3_i32 : i32
    %c8_i32_42 = arith.constant 8 : i32
    %116 = arith.cmpi slt, %115, %c8_i32_42 : i32
    %117 = arith.select %116, %114, %91 : vector<8x128xf32>
    %118 = arith.select %116, %112, %92 : vector<8x128xf32>
    %c4_i32 = arith.constant 4 : i32
    %119 = arith.index_cast %c4_i32 : i32 to index
    %c0_43 = arith.constant 0 : index
    %c0_44 = arith.constant 0 : index
    %120 = vector.load %arg11[%119, %c0_43, %c0_44] : memref<8x8x512xf32, #tpu.memory_space<vmem>>, vector<1x8x512xf32>
    %121 = vector.shape_cast %120 : vector<1x8x512xf32> to vector<8x512xf32>
    %c0_45 = arith.constant 0 : index
    %c0_46 = arith.constant 0 : index
    %122 = vector.load %arg4[%c0_45, %c0_46] : memref<128x512xf32, #tpu.memory_space<vmem>>, vector<128x512xf32>
    %cst_47 = arith.constant dense<0.000000e+00> : vector<8x512xf32>
    %123 = tpu.matmul %117, %122, %cst_47 {dimension_numbers = #tpu.dot_dimension_numbers<[1], [0], [0], [1], [0, 0, 1, 1], [], []>} : vector<8x128xf32>, vector<128x512xf32>, vector<8x512xf32> -> vector<8x512xf32>
    %124 = arith.addf %121, %123 : vector<8x512xf32>
    %125 = vector.extract_strided_slice %124 {offsets = [0, 0], sizes = [8, 384], strides = [1, 1]} : vector<8x512xf32> to vector<8x384xf32>
    %126 = arith.negf %125 : vector<8x384xf32>
    %127 = math.exp %126 : vector<8x384xf32>
    %cst_48 = arith.constant 1.000000e+00 : f32
    %128 = vector.broadcast %cst_48 : f32 to vector<8x384xf32>
    %129 = arith.addf %128, %127 : vector<8x384xf32>
    %130 = arith.divf %128, %129 : vector<8x384xf32>
    %131 = vector.extract_strided_slice %130 {offsets = [0, 0], sizes = [8, 128], strides = [1, 1]} : vector<8x384xf32> to vector<8x128xf32>
    %132 = vector.extract_strided_slice %130 {offsets = [0, 128], sizes = [8, 128], strides = [1, 1]} : vector<8x384xf32> to vector<8x128xf32>
    %133 = vector.extract_strided_slice %130 {offsets = [0, 256], sizes = [8, 128], strides = [1, 1]} : vector<8x384xf32> to vector<8x128xf32>
    %134 = vector.extract_strided_slice %124 {offsets = [0, 384], sizes = [8, 128], strides = [1, 1]} : vector<8x512xf32> to vector<8x128xf32>
    %135 = math.tanh %134 : vector<8x128xf32>
    %136 = arith.mulf %132, %118 : vector<8x128xf32>
    %137 = arith.mulf %131, %135 : vector<8x128xf32>
    %138 = arith.addf %136, %137 : vector<8x128xf32>
    %139 = math.tanh %138 : vector<8x128xf32>
    %140 = arith.mulf %133, %139 : vector<8x128xf32>
    %141 = arith.addi %12, %c4_i32 : i32
    %c8_i32_49 = arith.constant 8 : i32
    %142 = arith.cmpi slt, %141, %c8_i32_49 : i32
    %143 = arith.select %142, %140, %117 : vector<8x128xf32>
    %144 = arith.select %142, %138, %118 : vector<8x128xf32>
    %c5_i32 = arith.constant 5 : i32
    %145 = arith.index_cast %c5_i32 : i32 to index
    %c0_50 = arith.constant 0 : index
    %c0_51 = arith.constant 0 : index
    %146 = vector.load %arg11[%145, %c0_50, %c0_51] : memref<8x8x512xf32, #tpu.memory_space<vmem>>, vector<1x8x512xf32>
    %147 = vector.shape_cast %146 : vector<1x8x512xf32> to vector<8x512xf32>
    %c0_52 = arith.constant 0 : index
    %c0_53 = arith.constant 0 : index
    %148 = vector.load %arg4[%c0_52, %c0_53] : memref<128x512xf32, #tpu.memory_space<vmem>>, vector<128x512xf32>
    %cst_54 = arith.constant dense<0.000000e+00> : vector<8x512xf32>
    %149 = tpu.matmul %143, %148, %cst_54 {dimension_numbers = #tpu.dot_dimension_numbers<[1], [0], [0], [1], [0, 0, 1, 1], [], []>} : vector<8x128xf32>, vector<128x512xf32>, vector<8x512xf32> -> vector<8x512xf32>
    %150 = arith.addf %147, %149 : vector<8x512xf32>
    %151 = vector.extract_strided_slice %150 {offsets = [0, 0], sizes = [8, 384], strides = [1, 1]} : vector<8x512xf32> to vector<8x384xf32>
    %152 = arith.negf %151 : vector<8x384xf32>
    %153 = math.exp %152 : vector<8x384xf32>
    %cst_55 = arith.constant 1.000000e+00 : f32
    %154 = vector.broadcast %cst_55 : f32 to vector<8x384xf32>
    %155 = arith.addf %154, %153 : vector<8x384xf32>
    %156 = arith.divf %154, %155 : vector<8x384xf32>
    %157 = vector.extract_strided_slice %156 {offsets = [0, 0], sizes = [8, 128], strides = [1, 1]} : vector<8x384xf32> to vector<8x128xf32>
    %158 = vector.extract_strided_slice %156 {offsets = [0, 128], sizes = [8, 128], strides = [1, 1]} : vector<8x384xf32> to vector<8x128xf32>
    %159 = vector.extract_strided_slice %156 {offsets = [0, 256], sizes = [8, 128], strides = [1, 1]} : vector<8x384xf32> to vector<8x128xf32>
    %160 = vector.extract_strided_slice %150 {offsets = [0, 384], sizes = [8, 128], strides = [1, 1]} : vector<8x512xf32> to vector<8x128xf32>
    %161 = math.tanh %160 : vector<8x128xf32>
    %162 = arith.mulf %158, %144 : vector<8x128xf32>
    %163 = arith.mulf %157, %161 : vector<8x128xf32>
    %164 = arith.addf %162, %163 : vector<8x128xf32>
    %165 = math.tanh %164 : vector<8x128xf32>
    %166 = arith.mulf %159, %165 : vector<8x128xf32>
    %167 = arith.addi %12, %c5_i32 : i32
    %c8_i32_56 = arith.constant 8 : i32
    %168 = arith.cmpi slt, %167, %c8_i32_56 : i32
    %169 = arith.select %168, %166, %143 : vector<8x128xf32>
    %170 = arith.select %168, %164, %144 : vector<8x128xf32>
    %c6_i32 = arith.constant 6 : i32
    %171 = arith.index_cast %c6_i32 : i32 to index
    %c0_57 = arith.constant 0 : index
    %c0_58 = arith.constant 0 : index
    %172 = vector.load %arg11[%171, %c0_57, %c0_58] : memref<8x8x512xf32, #tpu.memory_space<vmem>>, vector<1x8x512xf32>
    %173 = vector.shape_cast %172 : vector<1x8x512xf32> to vector<8x512xf32>
    %c0_59 = arith.constant 0 : index
    %c0_60 = arith.constant 0 : index
    %174 = vector.load %arg4[%c0_59, %c0_60] : memref<128x512xf32, #tpu.memory_space<vmem>>, vector<128x512xf32>
    %cst_61 = arith.constant dense<0.000000e+00> : vector<8x512xf32>
    %175 = tpu.matmul %169, %174, %cst_61 {dimension_numbers = #tpu.dot_dimension_numbers<[1], [0], [0], [1], [0, 0, 1, 1], [], []>} : vector<8x128xf32>, vector<128x512xf32>, vector<8x512xf32> -> vector<8x512xf32>
    %176 = arith.addf %173, %175 : vector<8x512xf32>
    %177 = vector.extract_strided_slice %176 {offsets = [0, 0], sizes = [8, 384], strides = [1, 1]} : vector<8x512xf32> to vector<8x384xf32>
    %178 = arith.negf %177 : vector<8x384xf32>
    %179 = math.exp %178 : vector<8x384xf32>
    %cst_62 = arith.constant 1.000000e+00 : f32
    %180 = vector.broadcast %cst_62 : f32 to vector<8x384xf32>
    %181 = arith.addf %180, %179 : vector<8x384xf32>
    %182 = arith.divf %180, %181 : vector<8x384xf32>
    %183 = vector.extract_strided_slice %182 {offsets = [0, 0], sizes = [8, 128], strides = [1, 1]} : vector<8x384xf32> to vector<8x128xf32>
    %184 = vector.extract_strided_slice %182 {offsets = [0, 128], sizes = [8, 128], strides = [1, 1]} : vector<8x384xf32> to vector<8x128xf32>
    %185 = vector.extract_strided_slice %182 {offsets = [0, 256], sizes = [8, 128], strides = [1, 1]} : vector<8x384xf32> to vector<8x128xf32>
    %186 = vector.extract_strided_slice %176 {offsets = [0, 384], sizes = [8, 128], strides = [1, 1]} : vector<8x512xf32> to vector<8x128xf32>
    %187 = math.tanh %186 : vector<8x128xf32>
    %188 = arith.mulf %184, %170 : vector<8x128xf32>
    %189 = arith.mulf %183, %187 : vector<8x128xf32>
    %190 = arith.addf %188, %189 : vector<8x128xf32>
    %191 = math.tanh %190 : vector<8x128xf32>
    %192 = arith.mulf %185, %191 : vector<8x128xf32>
    %193 = arith.addi %12, %c6_i32 : i32
    %c8_i32_63 = arith.constant 8 : i32
    %194 = arith.cmpi slt, %193, %c8_i32_63 : i32
    %195 = arith.select %194, %192, %169 : vector<8x128xf32>
    %196 = arith.select %194, %190, %170 : vector<8x128xf32>
    %c7_i32 = arith.constant 7 : i32
    %197 = arith.index_cast %c7_i32 : i32 to index
    %c0_64 = arith.constant 0 : index
    %c0_65 = arith.constant 0 : index
    %198 = vector.load %arg11[%197, %c0_64, %c0_65] : memref<8x8x512xf32, #tpu.memory_space<vmem>>, vector<1x8x512xf32>
    %199 = vector.shape_cast %198 : vector<1x8x512xf32> to vector<8x512xf32>
    %c0_66 = arith.constant 0 : index
    %c0_67 = arith.constant 0 : index
    %200 = vector.load %arg4[%c0_66, %c0_67] : memref<128x512xf32, #tpu.memory_space<vmem>>, vector<128x512xf32>
    %cst_68 = arith.constant dense<0.000000e+00> : vector<8x512xf32>
    %201 = tpu.matmul %195, %200, %cst_68 {dimension_numbers = #tpu.dot_dimension_numbers<[1], [0], [0], [1], [0, 0, 1, 1], [], []>} : vector<8x128xf32>, vector<128x512xf32>, vector<8x512xf32> -> vector<8x512xf32>
    %202 = arith.addf %199, %201 : vector<8x512xf32>
    %203 = vector.extract_strided_slice %202 {offsets = [0, 0], sizes = [8, 384], strides = [1, 1]} : vector<8x512xf32> to vector<8x384xf32>
    %204 = arith.negf %203 : vector<8x384xf32>
    %205 = math.exp %204 : vector<8x384xf32>
    %cst_69 = arith.constant 1.000000e+00 : f32
    %206 = vector.broadcast %cst_69 : f32 to vector<8x384xf32>
    %207 = arith.addf %206, %205 : vector<8x384xf32>
    %208 = arith.divf %206, %207 : vector<8x384xf32>
    %209 = vector.extract_strided_slice %208 {offsets = [0, 0], sizes = [8, 128], strides = [1, 1]} : vector<8x384xf32> to vector<8x128xf32>
    %210 = vector.extract_strided_slice %208 {offsets = [0, 128], sizes = [8, 128], strides = [1, 1]} : vector<8x384xf32> to vector<8x128xf32>
    %211 = vector.extract_strided_slice %208 {offsets = [0, 256], sizes = [8, 128], strides = [1, 1]} : vector<8x384xf32> to vector<8x128xf32>
    %212 = vector.extract_strided_slice %202 {offsets = [0, 384], sizes = [8, 128], strides = [1, 1]} : vector<8x512xf32> to vector<8x128xf32>
    %213 = math.tanh %212 : vector<8x128xf32>
    %214 = arith.mulf %210, %196 : vector<8x128xf32>
    %215 = arith.mulf %209, %213 : vector<8x128xf32>
    %216 = arith.addf %214, %215 : vector<8x128xf32>
    %217 = math.tanh %216 : vector<8x128xf32>
    %218 = arith.mulf %211, %217 : vector<8x128xf32>
    %219 = arith.addi %12, %c7_i32 : i32
    %c8_i32_70 = arith.constant 8 : i32
    %220 = arith.cmpi slt, %219, %c8_i32_70 : i32
    %221 = arith.select %220, %218, %195 : vector<8x128xf32>
    %222 = arith.select %220, %216, %196 : vector<8x128xf32>
    %c8_i32_71 = arith.constant 8 : i32
    %c0_72 = arith.constant 0 : index
    %c0_73 = arith.constant 0 : index
    %223 = vector.load %arg9[%c0_72, %c0_73] : memref<8x128xf32, #tpu.memory_space<vmem>>, vector<8x128xf32>
    tpu.vector_store %arg9[%c0_72, %c0_73], %221 {strides = array<i32>} : memref<8x128xf32, #tpu.memory_space<vmem>>, vector<8x128xf32>,
    %c0_74 = arith.constant 0 : index
    %c0_75 = arith.constant 0 : index
    %224 = vector.load %arg10[%c0_74, %c0_75] : memref<8x128xf32, #tpu.memory_space<vmem>>, vector<8x128xf32>
    tpu.vector_store %arg10[%c0_74, %c0_75], %222 {strides = array<i32>} : memref<8x128xf32, #tpu.memory_space<vmem>>, vector<8x128xf32>,
    %c0_i32_76 = arith.constant 0 : i32
    %225 = arith.cmpi eq, %arg1, %c0_i32_76 : i32
    %226 = arith.extui %225 : i1 to i32
    %c0_i32_77 = arith.constant 0 : i32
    %227 = arith.cmpi ne, %226, %c0_i32_77 : i32
    scf.if %227 {
      %c0_78 = arith.constant 0 : index
      %c0_79 = arith.constant 0 : index
      %228 = vector.load %arg6[%c0_78, %c0_79] : memref<128x128xf32, #tpu.memory_space<vmem>>, vector<128x128xf32>
      %cst_80 = arith.constant dense<0.000000e+00> : vector<8x128xf32>
      %229 = tpu.matmul %221, %228, %cst_80 {dimension_numbers = #tpu.dot_dimension_numbers<[1], [0], [0], [1], [0, 0, 1, 1], [], []>} : vector<8x128xf32>, vector<128x128xf32>, vector<8x128xf32> -> vector<8x128xf32>
      %c0_81 = arith.constant 0 : index
      %c0_82 = arith.constant 0 : index
      %230 = vector.load %arg7[%c0_81, %c0_82] : memref<1x128xf32, #tpu.memory_space<vmem>>, vector<1x128xf32>
      %231 = vector.broadcast %230 : vector<1x128xf32> to vector<8x128xf32>
      %232 = arith.addf %229, %231 : vector<8x128xf32>
      %c0_83 = arith.constant 0 : index
      %c0_84 = arith.constant 0 : index
      %233 = vector.load %arg8[%c0_83, %c0_84] : memref<8x128xf32, #tpu.memory_space<vmem>>, vector<8x128xf32>
      tpu.vector_store %arg8[%c0_83, %c0_84], %232 {strides = array<i32>} : memref<8x128xf32, #tpu.memory_space<vmem>>, vector<8x128xf32>,
    } else {
    }
    return
  }
  func.func @transform_0(%arg0: i32, %arg1: i32) -> (i32, i32, i32) {
    %c0_i32 = arith.constant 0 : i32
    %c0_i32_0 = arith.constant 0 : i32
    return %arg1, %arg0, %c0_i32 : i32, i32, i32
  }
  func.func @transform_1(%arg0: i32, %arg1: i32) -> (i32, i32) {
    %c0_i32 = arith.constant 0 : i32
    %c0_i32_0 = arith.constant 0 : i32
    %c0_i32_1 = arith.constant 0 : i32
    return %c0_i32, %c0_i32_0 : i32, i32
  }
  func.func @transform_2(%arg0: i32, %arg1: i32) -> (i32, i32) {
    %c0_i32 = arith.constant 0 : i32
    %c0_i32_0 = arith.constant 0 : i32
    %c0_i32_1 = arith.constant 0 : i32
    return %c0_i32, %c0_i32_0 : i32, i32
  }
  func.func @transform_3(%arg0: i32, %arg1: i32) -> (i32, i32) {
    %c0_i32 = arith.constant 0 : i32
    %c0_i32_0 = arith.constant 0 : i32
    %c0_i32_1 = arith.constant 0 : i32
    return %c0_i32, %c0_i32_0 : i32, i32
  }
  func.func @transform_4(%arg0: i32, %arg1: i32) -> (i32, i32) {
    %c0_i32 = arith.constant 0 : i32
    %c0_i32_0 = arith.constant 0 : i32
    %c0_i32_1 = arith.constant 0 : i32
    return %c0_i32, %c0_i32_0 : i32, i32
  }
  func.func @transform_5(%arg0: i32, %arg1: i32) -> (i32, i32) {
    %c0_i32 = arith.constant 0 : i32
    %c0_i32_0 = arith.constant 0 : i32
    %c0_i32_1 = arith.constant 0 : i32
    return %c0_i32, %c0_i32_0 : i32, i32
  }
  func.func @transform_6(%arg0: i32, %arg1: i32) -> (i32, i32) {
    %c0_i32 = arith.constant 0 : i32
    %c0_i32_0 = arith.constant 0 : i32
    return %arg0, %c0_i32 : i32, i32
  }
}

</mosaic_0001>

<llo_original>
// kernel: sentiment_forward.1
$region0: #{sentiment_forward.1}
  #allocation0 [shape = 'u32[]', space=smem, size = 0x4, offset = 0x4, fixed_abs, tag = 'smem constant byte address 0x4 - core index']
  #allocation1 [shape = 'u32[72,128]{1,0:T(1,128)}', space=vmem, size = 0x9000, scoped, tag = 'internal scratch']
  #allocation2 [shape = 'f32[8,128]{1,0:T(8,128)}', space=vmem, size = 0x1000, scoped, tag = 'scratch operand']
  #allocation3 [shape = 'f32[8,128]{1,0:T(8,128)}', space=vmem, size = 0x1000, scoped, tag = 'scratch operand']
  #allocation4 [shape = 'f32[8,8,512]{2,1,0:T(8,128)}', space=vmem, size = 0x20000, scoped, tag = 'scratch operand']
  %s0 = inlined_call_operand.vmem [shape: f32[8,8,32], index: 0, kind: input, shape index: {}]
  %s1 = inlined_call_operand.vmem [shape: f32[32,512], index: 1, kind: input, shape index: {}]
  %s2 = inlined_call_operand.vmem [shape: f32[128,512], index: 2, kind: input, shape index: {}]
  %s3 = inlined_call_operand.vmem [shape: f32[1,512], index: 3, kind: input, shape index: {}]
  %s4 = inlined_call_operand.vmem [shape: f32[128,128], index: 4, kind: input, shape index: {}]
  %s5 = inlined_call_operand.vmem [shape: f32[1,128], index: 5, kind: input, shape index: {}]
  %s6 = inlined_call_operand.vmem [shape: f32[8,128], index: 6, kind: output, shape index: {}]
  %s7 = sld [smem:[#allocation0]]
  $region42: #{sentiment_forward.1} parent=0
    _
  %s9 = ssub.s32 1, %s7
  %s10 = scalar_select 0, %s9, %s7
  // Predicated region
  $region2: #{sentiment_forward.1} parent=0 // pred_check
    _
  $region3: #{sentiment_forward.1} parent=0 // pred_check_branch
    %12 = sbr.rel (0) target = $region5
  $region4: #{sentiment_forward.1} parent=0 // pred_region
    _
  $region5: #{sentiment_forward.1} parent=0 // pred_fallthru
    _
  // Predicated region
  $region6: #{sentiment_forward.1} parent=0 // pred_check
    _
  $region7: #{sentiment_forward.1} parent=0 // pred_check_branch
    %14 = sbr.rel (0) target = $region9
  $region8: #{sentiment_forward.1} parent=0 // pred_region
    _
  $region9: #{sentiment_forward.1} parent=0 // pred_fallthru
    _
  // Predicated region
  $region10: #{sentiment_forward.1} parent=0 // pred_check
    _
  $region11: #{sentiment_forward.1} parent=0 // pred_check_branch
    %16 = sbr.rel (0) target = $region13
  $region12: #{sentiment_forward.1} parent=0 // pred_region
    _
  $region13: #{sentiment_forward.1} parent=0 // pred_fallthru
    _
  // Predicated region
  $region14: #{sentiment_forward.1} parent=0 // pred_check
    _
  $region15: #{sentiment_forward.1} parent=0 // pred_check_branch
    %18 = sbr.rel (0) target = $region17
  $region16: #{sentiment_forward.1} parent=0 // pred_region
    _
  $region17: #{sentiment_forward.1} parent=0 // pred_fallthru
    _
  // Predicated region
  $region18: #{sentiment_forward.1} parent=0 // pred_check
    _
  $region19: #{sentiment_forward.1} parent=0 // pred_check_branch
    %20 = sbr.rel (0) target = $region21
  $region20: #{sentiment_forward.1} parent=0 // pred_region
    _
  $region21: #{sentiment_forward.1} parent=0 // pred_fallthru
    _
  // Predicated region
  $region22: #{sentiment_forward.1} parent=0 // pred_check
    _
  $region23: #{sentiment_forward.1} parent=0 // pred_check_branch
    %22 = sbr.rel (0) target = $region25
  $region24: #{sentiment_forward.1} parent=0 // pred_region
    _
  $region25: #{sentiment_forward.1} parent=0 // pred_fallthru
    _
  %p23 = scmp.eq.s32.totalorder 0, 0
  // Predicated region
  $region26: #{sentiment_forward.1} parent=0 // pred_check
    %p24 = pneg %p23
  $region27: #{sentiment_forward.1} parent=0 // pred_check_branch
    %26 = sbr.rel (%p24) target = $region29
  $region28: #{sentiment_forward.1} parent=0 // pred_region
    %27 = vst [vmem:[#allocation2] sm:$0xff] 0.0
    %28 = vst [vmem:[#allocation3] sm:$0xff] 0.0
  $region29: #{sentiment_forward.1} parent=0 // pred_fallthru
    _
  %v29 = vld [vmem:[%s0] sm:$0xff]
  %v30 = vld [vmem:[%s0 + $0x8] sm:$0xff]
  %v31 = vld [vmem:[%s0 + $0x10] sm:$0xff]
  %v32 = vld [vmem:[%s0 + $0x18] sm:$0xff]
  %v33 = vld [vmem:[%s0 + $0x20] sm:$0xff]
  %v34 = vld [vmem:[%s0 + $0x28] sm:$0xff]
  %v35 = vld [vmem:[%s0 + $0x30] sm:$0xff]
  %v36 = vld [vmem:[%s0 + $0x38] sm:$0xff]
  %v37 = vld [vmem:[%s1] sm:$0xff]
  %v38 = vld [vmem:[%s1 + $0x8] sm:$0xff]
  %v39 = vld [vmem:[%s1 + $0x10] sm:$0xff]
  %v40 = vld [vmem:[%s1 + $0x18] sm:$0xff]
  %v41 = vld [vmem:[%s1 + $0x20] sm:$0xff]
  %v42 = vld [vmem:[%s1 + $0x28] sm:$0xff]
  %v43 = vld [vmem:[%s1 + $0x30] sm:$0xff]
  %v44 = vld [vmem:[%s1 + $0x38] sm:$0xff]
  %v45 = vld [vmem:[%s1 + $0x40] sm:$0xff]
  %v46 = vld [vmem:[%s1 + $0x48] sm:$0xff]
  %v47 = vld [vmem:[%s1 + $0x50] sm:$0xff]
  %v48 = vld [vmem:[%s1 + $0x58] sm:$0xff]
  %v49 = vld [vmem:[%s1 + $0x60] sm:$0xff]
  %v50 = vld [vmem:[%s1 + $0x68] sm:$0xff]
  %v51 = vld [vmem:[%s1 + $0x70] sm:$0xff]
  %v52 = vld [vmem:[%s1 + $0x78] sm:$0xff]
  %v53 = vld [vmem:[%s3] sm:$0xf]
  %v55 = vperm.slane %v53, 0
  %v56 = vperm.slane %v53, 1
  %v57 = vperm.slane %v53, 2
  %v58 = vperm.slane %v53, 3
  %vm63 = vcmask 261120
  %v65 = vsel %vm63, %v29, 0
  %v68 = vsel %vm63, %v30, 0
  %v71 = vsel %vm63, %v31, 0
  %v74 = vsel %vm63, %v32, 0
  %v77 = vsel %vm63, %v33, 0
  %v80 = vsel %vm63, %v34, 0
  %v83 = vsel %vm63, %v35, 0
  %v86 = vsel %vm63, %v36, 0
  %88 = vmatpush.msra.mxu0 0.0
  %89 = vmatpush.msra.mxu0 0.0
  %90 = vmatpush.msra.mxu0 0.0
  %91 = vmatpush.msra.mxu0 0.0
  %92 = vmatpush.msra.mxu0 0.0
  %93 = vmatpush.msra.mxu0 0.0
  %94 = vmatpush.msra.mxu0 0.0
  %95 = vmatpush.msra.mxu0 0.0
  %96 = vmatpush.msra.mxu0 0.0
  %97 = vmatpush.msra.mxu0 0.0
  %98 = vmatpush.msra.mxu0 0.0
  %99 = vmatpush.msra.mxu0 0.0
  %100 = vmatpush.msra.mxu0 %v49
  %101 = vmatpush.msra.mxu0 %v45
  %102 = vmatpush.msra.mxu0 %v41
  %103 = vmatpush.msra.mxu0 %v37
  %104 = vmatmul.f32.gmra.mxu0 %v65
  %v105 = vpop.f32.mrf.mxu0
  %v106 = vadd.f32 %v55, %v105
  %107 = vmatmul.f32.gmra.mxu0 %v68
  %v108 = vpop.f32.mrf.mxu0
  %v109 = vadd.f32 %v55, %v108
  %110 = vmatmul.f32.gmra.mxu0 %v71
  %v111 = vpop.f32.mrf.mxu0
  %v112 = vadd.f32 %v55, %v111
  %113 = vmatmul.f32.gmra.mxu0 %v74
  %v114 = vpop.f32.mrf.mxu0
  %v115 = vadd.f32 %v55, %v114
  %116 = vmatmul.f32.gmra.mxu0 %v77
  %v117 = vpop.f32.mrf.mxu0
  %v118 = vadd.f32 %v55, %v117
  %119 = vmatmul.f32.gmra.mxu0 %v80
  %v120 = vpop.f32.mrf.mxu0
  %v121 = vadd.f32 %v55, %v120
  %122 = vmatmul.f32.gmra.mxu0 %v83
  %v123 = vpop.f32.mrf.mxu0
  %v124 = vadd.f32 %v55, %v123
  %125 = vmatmul.f32.gmra.mxu0 %v86
  %v126 = vpop.f32.mrf.mxu0
  %v127 = vadd.f32 %v55, %v126
  %128 = vdwg.mxu0
  %129 = vmatpush.msra.mxu0 0.0
  %130 = vmatpush.msra.mxu0 0.0
  %131 = vmatpush.msra.mxu0 0.0
  %132 = vmatpush.msra.mxu0 0.0
  %133 = vmatpush.msra.mxu0 0.0
  %134 = vmatpush.msra.mxu0 0.0
  %135 = vmatpush.msra.mxu0 0.0
  %136 = vmatpush.msra.mxu0 0.0
  %137 = vmatpush.msra.mxu0 0.0
  %138 = vmatpush.msra.mxu0 0.0
  %139 = vmatpush.msra.mxu0 0.0
  %140 = vmatpush.msra.mxu0 0.0
  %141 = vmatpush.msra.mxu0 %v50
  %142 = vmatpush.msra.mxu0 %v46
  %143 = vmatpush.msra.mxu0 %v42
  %144 = vmatpush.msra.mxu0 %v38
  %145 = vmatmul.f32.gmra.mxu0 %v65
  %v146 = vpop.f32.mrf.mxu0
  %v147 = vadd.f32 %v56, %v146
  %148 = vmatmul.f32.gmra.mxu0 %v68
  %v149 = vpop.f32.mrf.mxu0
  %v150 = vadd.f32 %v56, %v149
  %151 = vmatmul.f32.gmra.mxu0 %v71
  %v152 = vpop.f32.mrf.mxu0
  %v153 = vadd.f32 %v56, %v152
  %154 = vmatmul.f32.gmra.mxu0 %v74
  %v155 = vpop.f32.mrf.mxu0
  %v156 = vadd.f32 %v56, %v155
  %157 = vmatmul.f32.gmra.mxu0 %v77
  %v158 = vpop.f32.mrf.mxu0
  %v159 = vadd.f32 %v56, %v158
  %160 = vmatmul.f32.gmra.mxu0 %v80
  %v161 = vpop.f32.mrf.mxu0
  %v162 = vadd.f32 %v56, %v161
  %163 = vmatmul.f32.gmra.mxu0 %v83
  %v164 = vpop.f32.mrf.mxu0
  %v165 = vadd.f32 %v56, %v164
  %166 = vmatmul.f32.gmra.mxu0 %v86
  %v167 = vpop.f32.mrf.mxu0
  %v168 = vadd.f32 %v56, %v167
  %169 = vdwg.mxu0
  %170 = vmatpush.msra.mxu0 0.0
  %171 = vmatpush.msra.mxu0 0.0
  %172 = vmatpush.msra.mxu0 0.0
  %173 = vmatpush.msra.mxu0 0.0
  %174 = vmatpush.msra.mxu0 0.0
  %175 = vmatpush.msra.mxu0 0.0
  %176 = vmatpush.msra.mxu0 0.0
  %177 = vmatpush.msra.mxu0 0.0
  %178 = vmatpush.msra.mxu0 0.0
  %179 = vmatpush.msra.mxu0 0.0
  %180 = vmatpush.msra.mxu0 0.0
  %181 = vmatpush.msra.mxu0 0.0
  %182 = vmatpush.msra.mxu0 %v51
  %183 = vmatpush.msra.mxu0 %v47
  %184 = vmatpush.msra.mxu0 %v43
  %185 = vmatpush.msra.mxu0 %v39
  %186 = vmatmul.f32.gmra.mxu0 %v65
  %v187 = vpop.f32.mrf.mxu0
  %v188 = vadd.f32 %v57, %v187
  %189 = vmatmul.f32.gmra.mxu0 %v68
  %v190 = vpop.f32.mrf.mxu0
  %v191 = vadd.f32 %v57, %v190
  %192 = vmatmul.f32.gmra.mxu0 %v71
  %v193 = vpop.f32.mrf.mxu0
  %v194 = vadd.f32 %v57, %v193
  %195 = vmatmul.f32.gmra.mxu0 %v74
  %v196 = vpop.f32.mrf.mxu0
  %v197 = vadd.f32 %v57, %v196
  %198 = vmatmul.f32.gmra.mxu0 %v77
  %v199 = vpop.f32.mrf.mxu0
  %v200 = vadd.f32 %v57, %v199
  %201 = vmatmul.f32.gmra.mxu0 %v80
  %v202 = vpop.f32.mrf.mxu0
  %v203 = vadd.f32 %v57, %v202
  %204 = vmatmul.f32.gmra.mxu0 %v83
  %v205 = vpop.f32.mrf.mxu0
  %v206 = vadd.f32 %v57, %v205
  %207 = vmatmul.f32.gmra.mxu0 %v86
  %v208 = vpop.f32.mrf.mxu0
  %v209 = vadd.f32 %v57, %v208
  %210 = vdwg.mxu0
  %211 = vmatpush.msra.mxu0 0.0
  %212 = vmatpush.msra.mxu0 0.0
  %213 = vmatpush.msra.mxu0 0.0
  %214 = vmatpush.msra.mxu0 0.0
  %215 = vmatpush.msra.mxu0 0.0
  %216 = vmatpush.msra.mxu0 0.0
  %217 = vmatpush.msra.mxu0 0.0
  %218 = vmatpush.msra.mxu0 0.0
  %219 = vmatpush.msra.mxu0 0.0
  %220 = vmatpush.msra.mxu0 0.0
  %221 = vmatpush.msra.mxu0 0.0
  %222 = vmatpush.msra.mxu0 0.0
  %223 = vmatpush.msra.mxu0 %v52
  %224 = vmatpush.msra.mxu0 %v48
  %225 = vmatpush.msra.mxu0 %v44
  %226 = vmatpush.msra.mxu0 %v40
  %227 = vmatmul.f32.gmra.mxu0 %v65
  %v228 = vpop.f32.mrf.mxu0
  %v229 = vadd.f32 %v58, %v228
  %230 = vmatmul.f32.gmra.mxu0 %v68
  %v231 = vpop.f32.mrf.mxu0
  %v232 = vadd.f32 %v58, %v231
  %233 = vmatmul.f32.gmra.mxu0 %v71
  %v234 = vpop.f32.mrf.mxu0
  %v235 = vadd.f32 %v58, %v234
  %236 = vmatmul.f32.gmra.mxu0 %v74
  %v237 = vpop.f32.mrf.mxu0
  %v238 = vadd.f32 %v58, %v237
  %239 = vmatmul.f32.gmra.mxu0 %v77
  %v240 = vpop.f32.mrf.mxu0
  %v241 = vadd.f32 %v58, %v240
  %242 = vmatmul.f32.gmra.mxu0 %v80
  %v243 = vpop.f32.mrf.mxu0
  %v244 = vadd.f32 %v58, %v243
  %245 = vmatmul.f32.gmra.mxu0 %v83
  %v246 = vpop.f32.mrf.mxu0
  %v247 = vadd.f32 %v58, %v246
  %248 = vmatmul.f32.gmra.mxu0 %v86
  %v249 = vpop.f32.mrf.mxu0
  %v250 = vadd.f32 %v58, %v249
  %251 = vdwg.mxu0
  %252 = vst [vmem:[#allocation4] sm:$0xff] %v106
  %253 = vst [vmem:[#allocation4 + $0x8] sm:$0xff] %v147
  %254 = vst [vmem:[#allocation4 + $0x10] sm:$0xff] %v188
  %255 = vst [vmem:[#allocation4 + $0x18] sm:$0xff] %v229
  %256 = vst [vmem:[#allocation4 + $0x20] sm:$0xff] %v109
  %257 = vst [vmem:[#allocation4 + $0x28] sm:$0xff] %v150
  %258 = vst [vmem:[#allocation4 + $0x30] sm:$0xff] %v191
  %259 = vst [vmem:[#allocation4 + $0x38] sm:$0xff] %v232
  %260 = vst [vmem:[#allocation4 + $0x40] sm:$0xff] %v112
  %261 = vst [vmem:[#allocation4 + $0x48] sm:$0xff] %v153
  %262 = vst [vmem:[#allocation4 + $0x50] sm:$0xff] %v194
  %263 = vst [vmem:[#allocation4 + $0x58] sm:$0xff] %v235
  %264 = vst [vmem:[#allocation4 + $0x60] sm:$0xff] %v115
  %265 = vst [vmem:[#allocation4 + $0x68] sm:$0xff] %v156
  %266 = vst [vmem:[#allocation4 + $0x70] sm:$0xff] %v197
  %267 = vst [vmem:[#allocation4 + $0x78] sm:$0xff] %v238
  %268 = vst [vmem:[#allocation4 + $0x80] sm:$0xff] %v118
  %269 = vst [vmem:[#allocation4 + $0x88] sm:$0xff] %v159
  %270 = vst [vmem:[#allocation4 + $0x90] sm:$0xff] %v200
  %271 = vst [vmem:[#allocation4 + $0x98] sm:$0xff] %v241
  %272 = vst [vmem:[#allocation4 + $0xa0] sm:$0xff] %v121
  %273 = vst [vmem:[#allocation4 + $0xa8] sm:$0xff] %v162
  %274 = vst [vmem:[#allocation4 + $0xb0] sm:$0xff] %v203
  %275 = vst [vmem:[#allocation4 + $0xb8] sm:$0xff] %v244
  %276 = vst [vmem:[#allocation4 + $0xc0] sm:$0xff] %v124
  %277 = vst [vmem:[#allocation4 + $0xc8] sm:$0xff] %v165
  %278 = vst [vmem:[#allocation4 + $0xd0] sm:$0xff] %v206
  %279 = vst [vmem:[#allocation4 + $0xd8] sm:$0xff] %v247
  %280 = vst [vmem:[#allocation4 + $0xe0] sm:$0xff] %v127
  %281 = vst [vmem:[#allocation4 + $0xe8] sm:$0xff] %v168
  %282 = vst [vmem:[#allocation4 + $0xf0] sm:$0xff] %v209
  %283 = vst [vmem:[#allocation4 + $0xf8] sm:$0xff] %v250
  %s284 = smul.u32 0, 8
  %v285 = vld [vmem:[#allocation2] sm:$0xff]
  %v286 = vld [vmem:[#allocation3] sm:$0xff]
  %v287 = vld [vmem:[#allocation4] sm:$0xff]
  %v288 = vld [vmem:[#allocation4 + $0x8] sm:$0xff]
  %v289 = vld [vmem:[#allocation4 + $0x10] sm:$0xff]
  %v290 = vld [vmem:[#allocation4 + $0x18] sm:$0xff]
  %v291 = vld [vmem:[%s2] sm:$0xff]
  %v292 = vld [vmem:[%s2 + $0x8] sm:$0xff]
  %v293 = vld [vmem:[%s2 + $0x10] sm:$0xff]
  %v294 = vld [vmem:[%s2 + $0x18] sm:$0xff]
  %v295 = vld [vmem:[%s2 + $0x20] sm:$0xff]
  %v296 = vld [vmem:[%s2 + $0x28] sm:$0xff]
  %v297 = vld [vmem:[%s2 + $0x30] sm:$0xff]
  %v298 = vld [vmem:[%s2 + $0x38] sm:$0xff]
  %v299 = vld [vmem:[%s2 + $0x40] sm:$0xff]
  %v300 = vld [vmem:[%s2 + $0x48] sm:$0xff]
  %v301 = vld [vmem:[%s2 + $0x50] sm:$0xff]
  %v302 = vld [vmem:[%s2 + $0x58] sm:$0xff]
  %v303 = vld [vmem:[%s2 + $0x60] sm:$0xff]
  %v304 = vld [vmem:[%s2 + $0x68] sm:$0xff]
  %v305 = vld [vmem:[%s2 + $0x70] sm:$0xff]
  %v306 = vld [vmem:[%s2 + $0x78] sm:$0xff]
  %v307 = vld [vmem:[%s2 + $0x80] sm:$0xff]
  %v308 = vld [vmem:[%s2 + $0x88] sm:$0xff]
  %v309 = vld [vmem:[%s2 + $0x90] sm:$0xff]
  %v310 = vld [vmem:[%s2 + $0x98] sm:$0xff]
  %v311 = vld [vmem:[%s2 + $0xa0] sm:$0xff]
  %v312 = vld [vmem:[%s2 + $0xa8] sm:$0xff]
  %v313 = vld [vmem:[%s2 + $0xb0] sm:$0xff]
  %v314 = vld [vmem:[%s2 + $0xb8] sm:$0xff]
  %v315 = vld [vmem:[%s2 + $0xc0] sm:$0xff]
  %v316 = vld [vmem:[%s2 + $0xc8] sm:$0xff]
  %v317 = vld [vmem:[%s2 + $0xd0] sm:$0xff]
  %v318 = vld [vmem:[%s2 + $0xd8] sm:$0xff]
  %v319 = vld [vmem:[%s2 + $0xe0] sm:$0xff]
  %v320 = vld [vmem:[%s2 + $0xe8] sm:$0xff]
  %v321 = vld [vmem:[%s2 + $0xf0] sm:$0xff]
  %v322 = vld [vmem:[%s2 + $0xf8] sm:$0xff]
  %v323 = vld [vmem:[%s2 + $0x100] sm:$0xff]
  %v324 = vld [vmem:[%s2 + $0x108] sm:$0xff]
  %v325 = vld [vmem:[%s2 + $0x110] sm:$0xff]
  %v326 = vld [vmem:[%s2 + $0x118] sm:$0xff]
  %v327 = vld [vmem:[%s2 + $0x120] sm:$0xff]
  %v328 = vld [vmem:[%s2 + $0x128] sm:$0xff]
  %v329 = vld [vmem:[%s2 + $0x130] sm:$0xff]
  %v330 = vld [vmem:[%s2 + $0x138] sm:$0xff]
  %v331 = vld [vmem:[%s2 + $0x140] sm:$0xff]
  %v332 = vld [vmem:[%s2 + $0x148] sm:$0xff]
  %v333 = vld [vmem:[%s2 + $0x150] sm:$0xff]
  %v334 = vld [vmem:[%s2 + $0x158] sm:$0xff]
  %v335 = vld [vmem:[%s2 + $0x160] sm:$0xff]
  %v336 = vld [vmem:[%s2 + $0x168] sm:$0xff]
  %v337 = vld [vmem:[%s2 + $0x170] sm:$0xff]
  %v338 = vld [vmem:[%s2 + $0x178] sm:$0xff]
  %v339 = vld [vmem:[%s2 + $0x180] sm:$0xff]
  %v340 = vld [vmem:[%s2 + $0x188] sm:$0xff]
  %v341 = vld [vmem:[%s2 + $0x190] sm:$0xff]
  %v342 = vld [vmem:[%s2 + $0x198] sm:$0xff]
  %v343 = vld [vmem:[%s2 + $0x1a0] sm:$0xff]
  %v344 = vld [vmem:[%s2 + $0x1a8] sm:$0xff]
  %v345 = vld [vmem:[%s2 + $0x1b0] sm:$0xff]
  %v346 = vld [vmem:[%s2 + $0x1b8] sm:$0xff]
  %v347 = vld [vmem:[%s2 + $0x1c0] sm:$0xff]
  %v348 = vld [vmem:[%s2 + $0x1c8] sm:$0xff]
  %v349 = vld [vmem:[%s2 + $0x1d0] sm:$0xff]
  %v350 = vld [vmem:[%s2 + $0x1d8] sm:$0xff]
  %v351 = vld [vmem:[%s2 + $0x1e0] sm:$0xff]
  %v352 = vld [vmem:[%s2 + $0x1e8] sm:$0xff]
  %v353 = vld [vmem:[%s2 + $0x1f0] sm:$0xff]
  %v354 = vld [vmem:[%s2 + $0x1f8] sm:$0xff]
  %355 = vmatpush.msra.mxu0 %v351
  %356 = vmatpush.msra.mxu0 %v347
  %357 = vmatpush.msra.mxu0 %v343
  %358 = vmatpush.msra.mxu0 %v339
  %359 = vmatpush.msra.mxu0 %v335
  %360 = vmatpush.msra.mxu0 %v331
  %361 = vmatpush.msra.mxu0 %v327
  %362 = vmatpush.msra.mxu0 %v323
  %363 = vmatpush.msra.mxu0 %v319
  %364 = vmatpush.msra.mxu0 %v315
  %365 = vmatpush.msra.mxu0 %v311
  %366 = vmatpush.msra.mxu0 %v307
  %367 = vmatpush.msra.mxu0 %v303
  %368 = vmatpush.msra.mxu0 %v299
  %369 = vmatpush.msra.mxu0 %v295
  %370 = vmatpush.msra.mxu0 %v291
  %371 = vmatmul.f32.gmra.mxu0 %v285
  %v372 = vpop.f32.mrf.mxu0
  %v373 = vadd.f32 0.0, %v372
  %374 = vdwg.mxu0
  %375 = vmatpush.msra.mxu0 %v352
  %376 = vmatpush.msra.mxu0 %v348
  %377 = vmatpush.msra.mxu0 %v344
  %378 = vmatpush.msra.mxu0 %v340
  %379 = vmatpush.msra.mxu0 %v336
  %380 = vmatpush.msra.mxu0 %v332
  %381 = vmatpush.msra.mxu0 %v328
  %382 = vmatpush.msra.mxu0 %v324
  %383 = vmatpush.msra.mxu0 %v320
  %384 = vmatpush.msra.mxu0 %v316
  %385 = vmatpush.msra.mxu0 %v312
  %386 = vmatpush.msra.mxu0 %v308
  %387 = vmatpush.msra.mxu0 %v304
  %388 = vmatpush.msra.mxu0 %v300
  %389 = vmatpush.msra.mxu0 %v296
  %390 = vmatpush.msra.mxu0 %v292
  %391 = vmatmul.f32.gmra.mxu0 %v285
  %v392 = vpop.f32.mrf.mxu0
  %v393 = vadd.f32 0.0, %v392
  %394 = vdwg.mxu0
  %395 = vmatpush.msra.mxu0 %v353
  %396 = vmatpush.msra.mxu0 %v349
  %397 = vmatpush.msra.mxu0 %v345
  %398 = vmatpush.msra.mxu0 %v341
  %399 = vmatpush.msra.mxu0 %v337
  %400 = vmatpush.msra.mxu0 %v333
  %401 = vmatpush.msra.mxu0 %v329
  %402 = vmatpush.msra.mxu0 %v325
  %403 = vmatpush.msra.mxu0 %v321
  %404 = vmatpush.msra.mxu0 %v317
  %405 = vmatpush.msra.mxu0 %v313
  %406 = vmatpush.msra.mxu0 %v309
  %407 = vmatpush.msra.mxu0 %v305
  %408 = vmatpush.msra.mxu0 %v301
  %409 = vmatpush.msra.mxu0 %v297
  %410 = vmatpush.msra.mxu0 %v293
  %411 = vmatmul.f32.gmra.mxu0 %v285
  %v412 = vpop.f32.mrf.mxu0
  %v413 = vadd.f32 0.0, %v412
  %414 = vdwg.mxu0
  %415 = vmatpush.msra.mxu0 %v354
  %416 = vmatpush.msra.mxu0 %v350
  %417 = vmatpush.msra.mxu0 %v346
  %418 = vmatpush.msra.mxu0 %v342
  %419 = vmatpush.msra.mxu0 %v338
  %420 = vmatpush.msra.mxu0 %v334
  %421 = vmatpush.msra.mxu0 %v330
  %422 = vmatpush.msra.mxu0 %v326
  %423 = vmatpush.msra.mxu0 %v322
  %424 = vmatpush.msra.mxu0 %v318
  %425 = vmatpush.msra.mxu0 %v314
  %426 = vmatpush.msra.mxu0 %v310
  %427 = vmatpush.msra.mxu0 %v306
  %428 = vmatpush.msra.mxu0 %v302
  %429 = vmatpush.msra.mxu0 %v298
  %430 = vmatpush.msra.mxu0 %v294
  %431 = vmatmul.f32.gmra.mxu0 %v285
  %v432 = vpop.f32.mrf.mxu0
  %v433 = vadd.f32 0.0, %v432
  %434 = vdwg.mxu0
  %v435 = vadd.f32 %v287, %v373
  %v436 = vadd.f32 %v288, %v393
  %v437 = vadd.f32 %v289, %v413
  %v438 = vadd.f32 %v290, %v433
  %v439 = vxor.u32 %v435, 2147483648
  %v440 = vxor.u32 %v436, 2147483648
  %v441 = vxor.u32 %v437, 2147483648
  %v442 = vmul.f32 %v439, 1.442695
  %v443 = vpow.pop %v442
  %v444 = vmul.f32 %v440, 1.442695
  %v445 = vpow.pop %v444
  %v446 = vmul.f32 %v441, 1.442695
  %v447 = vpow.pop %v446
  %v448 = vadd.f32 %v443, 1.0
  %v449 = vadd.f32 %v445, 1.0
  %v450 = vadd.f32 %v447, 1.0
  %v451 = vrcp.pop %v448
  %v452 = vmul.f32 %v448, %v451
  %v453 = vsub.f32 1.0, %v452
  %v454 = vmul.f32 %v451, %v453
  %v455 = vadd.f32 %v451, %v454
  %vm456 = vweird.f32 %v448
  %vm457 = vweird.f32 %v451
  %vm458 = vmor %vm456, %vm457
  %v459 = vsel %vm458, %v451, %v455
  %v460 = vand.u32 2147483647, %v448
  %vm461 = vcmp.eq.f32.partialorder %v460, 8.507059e+37
  %v462 = vand.u32 %v448, 2147483648
  %v463 = vor.u32 1.1754944e-38, %v462
  %v464 = vsel %vm461, %v463, %v459
  %v465 = vmul.f32 1.0, %v464
  %v466 = vrcp.pop %v449
  %v467 = vmul.f32 %v449, %v466
  %v468 = vsub.f32 1.0, %v467
  %v469 = vmul.f32 %v466, %v468
  %v470 = vadd.f32 %v466, %v469
  %vm471 = vweird.f32 %v449
  %vm472 = vweird.f32 %v466
  %vm473 = vmor %vm471, %vm472
  %v474 = vsel %vm473, %v466, %v470
  %v475 = vand.u32 2147483647, %v449
  %vm476 = vcmp.eq.f32.partialorder %v475, 8.507059e+37
  %v477 = vand.u32 %v449, 2147483648
  %v478 = vor.u32 1.1754944e-38, %v477
  %v479 = vsel %vm476, %v478, %v474
  %v480 = vmul.f32 1.0, %v479
  %v481 = vrcp.pop %v450
  %v482 = vmul.f32 %v450, %v481
  %v483 = vsub.f32 1.0, %v482
  %v484 = vmul.f32 %v481, %v483
  %v485 = vadd.f32 %v481, %v484
  %vm486 = vweird.f32 %v450
  %vm487 = vweird.f32 %v481
  %vm488 = vmor %vm486, %vm487
  %v489 = vsel %vm488, %v481, %v485
  %v490 = vand.u32 2147483647, %v450
  %vm491 = vcmp.eq.f32.partialorder %v490, 8.507059e+37
  %v492 = vand.u32 %v450, 2147483648
  %v493 = vor.u32 1.1754944e-38, %v492
  %v494 = vsel %vm491, %v493, %v489
  %v495 = vmul.f32 1.0, %v494
  %v496 = vtanh.pop %v438
  %v497 = vmul.f32 %v480, %v286
  %v498 = vmul.f32 %v465, %v496
  %v499 = vadd.f32 %v497, %v498
  %v500 = vtanh.pop %v499
  %v501 = vmul.f32 %v495, %v500
  %p502 = scmp.lt.s32.totalorder %s284, 8
  %s503 = scalar_select %p502, 1, 0
  %v504 = vstv %s503
  %vm505 = vcmp.eq.s32.totalorder %v504, 1
  %v506 = vsel %vm505, %v501, %v285
  %v507 = vsel %vm505, %v499, %v286
  %s508 = scalar_lea.vmem [#allocation4], 32
  %v509 = vld [vmem:[%s508] sm:$0xff]
  %v510 = vld [vmem:[%s508 + $0x8] sm:$0xff]
  %v511 = vld [vmem:[%s508 + $0x10] sm:$0xff]
  %v512 = vld [vmem:[%s508 + $0x18] sm:$0xff]
  %513 = vmatpush.msra.mxu0 %v351
  %514 = vmatpush.msra.mxu0 %v347
  %515 = vmatpush.msra.mxu0 %v343
  %516 = vmatpush.msra.mxu0 %v339
  %517 = vmatpush.msra.mxu0 %v335
  %518 = vmatpush.msra.mxu0 %v331
  %519 = vmatpush.msra.mxu0 %v327
  %520 = vmatpush.msra.mxu0 %v323
  %521 = vmatpush.msra.mxu0 %v319
  %522 = vmatpush.msra.mxu0 %v315
  %523 = vmatpush.msra.mxu0 %v311
  %524 = vmatpush.msra.mxu0 %v307
  %525 = vmatpush.msra.mxu0 %v303
  %526 = vmatpush.msra.mxu0 %v299
  %527 = vmatpush.msra.mxu0 %v295
  %528 = vmatpush.msra.mxu0 %v291
  %529 = vmatmul.f32.gmra.mxu0 %v506
  %v530 = vpop.f32.mrf.mxu0
  %v531 = vadd.f32 0.0, %v530
  %532 = vdwg.mxu0
  %533 = vmatpush.msra.mxu0 %v352
  %534 = vmatpush.msra.mxu0 %v348
  %535 = vmatpush.msra.mxu0 %v344
  %536 = vmatpush.msra.mxu0 %v340
  %537 = vmatpush.msra.mxu0 %v336
  %538 = vmatpush.msra.mxu0 %v332
  %539 = vmatpush.msra.mxu0 %v328
  %540 = vmatpush.msra.mxu0 %v324
  %541 = vmatpush.msra.mxu0 %v320
  %542 = vmatpush.msra.mxu0 %v316
  %543 = vmatpush.msra.mxu0 %v312
  %544 = vmatpush.msra.mxu0 %v308
  %545 = vmatpush.msra.mxu0 %v304
  %546 = vmatpush.msra.mxu0 %v300
  %547 = vmatpush.msra.mxu0 %v296
  %548 = vmatpush.msra.mxu0 %v292
  %549 = vmatmul.f32.gmra.mxu0 %v506
  %v550 = vpop.f32.mrf.mxu0
  %v551 = vadd.f32 0.0, %v550
  %552 = vdwg.mxu0
  %553 = vmatpush.msra.mxu0 %v353
  %554 = vmatpush.msra.mxu0 %v349
  %555 = vmatpush.msra.mxu0 %v345
  %556 = vmatpush.msra.mxu0 %v341
  %557 = vmatpush.msra.mxu0 %v337
  %558 = vmatpush.msra.mxu0 %v333
  %559 = vmatpush.msra.mxu0 %v329
  %560 = vmatpush.msra.mxu0 %v325
  %561 = vmatpush.msra.mxu0 %v321
  %562 = vmatpush.msra.mxu0 %v317
  %563 = vmatpush.msra.mxu0 %v313
  %564 = vmatpush.msra.mxu0 %v309
  %565 = vmatpush.msra.mxu0 %v305
  %566 = vmatpush.msra.mxu0 %v301
  %567 = vmatpush.msra.mxu0 %v297
  %568 = vmatpush.msra.mxu0 %v293
  %569 = vmatmul.f32.gmra.mxu0 %v506
  %v570 = vpop.f32.mrf.mxu0
  %v571 = vadd.f32 0.0, %v570
  %572 = vdwg.mxu0
  %573 = vmatpush.msra.mxu0 %v354
  %574 = vmatpush.msra.mxu0 %v350
  %575 = vmatpush.msra.mxu0 %v346
  %576 = vmatpush.msra.mxu0 %v342
  %577 = vmatpush.msra.mxu0 %v338
  %578 = vmatpush.msra.mxu0 %v334
  %579 = vmatpush.msra.mxu0 %v330
  %580 = vmatpush.msra.mxu0 %v326
  %581 = vmatpush.msra.mxu0 %v322
  %582 = vmatpush.msra.mxu0 %v318
  %583 = vmatpush.msra.mxu0 %v314
  %584 = vmatpush.msra.mxu0 %v310
  %585 = vmatpush.msra.mxu0 %v306
  %586 = vmatpush.msra.mxu0 %v302
  %587 = vmatpush.msra.mxu0 %v298
  %588 = vmatpush.msra.mxu0 %v294
  %589 = vmatmul.f32.gmra.mxu0 %v506
  %v590 = vpop.f32.mrf.mxu0
  %v591 = vadd.f32 0.0, %v590
  %592 = vdwg.mxu0
  %v593 = vadd.f32 %v509, %v531
  %v594 = vadd.f32 %v510, %v551
  %v595 = vadd.f32 %v511, %v571
  %v596 = vadd.f32 %v512, %v591
  %v597 = vxor.u32 %v593, 2147483648
  %v598 = vxor.u32 %v594, 2147483648
  %v599 = vxor.u32 %v595, 2147483648
  %v600 = vmul.f32 %v597, 1.442695
  %v601 = vpow.pop %v600
  %v602 = vmul.f32 %v598, 1.442695
  %v603 = vpow.pop %v602
  %v604 = vmul.f32 %v599, 1.442695
  %v605 = vpow.pop %v604
  %v606 = vadd.f32 %v601, 1.0
  %v607 = vadd.f32 %v603, 1.0
  %v608 = vadd.f32 %v605, 1.0
  %v609 = vrcp.pop %v606
  %v610 = vmul.f32 %v606, %v609
  %v611 = vsub.f32 1.0, %v610
  %v612 = vmul.f32 %v609, %v611
  %v613 = vadd.f32 %v609, %v612
  %vm614 = vweird.f32 %v606
  %vm615 = vweird.f32 %v609
  %vm616 = vmor %vm614, %vm615
  %v617 = vsel %vm616, %v609, %v613
  %v618 = vand.u32 2147483647, %v606
  %vm619 = vcmp.eq.f32.partialorder %v618, 8.507059e+37
  %v620 = vand.u32 %v606, 2147483648
  %v621 = vor.u32 1.1754944e-38, %v620
  %v622 = vsel %vm619, %v621, %v617
  %v623 = vmul.f32 1.0, %v622
  %v624 = vrcp.pop %v607
  %v625 = vmul.f32 %v607, %v624
  %v626 = vsub.f32 1.0, %v625
  %v627 = vmul.f32 %v624, %v626
  %v628 = vadd.f32 %v624, %v627
  %vm629 = vweird.f32 %v607
  %vm630 = vweird.f32 %v624
  %vm631 = vmor %vm629, %vm630
  %v632 = vsel %vm631, %v624, %v628
  %v633 = vand.u32 2147483647, %v607
  %vm634 = vcmp.eq.f32.partialorder %v633, 8.507059e+37
  %v635 = vand.u32 %v607, 2147483648
  %v636 = vor.u32 1.1754944e-38, %v635
  %v637 = vsel %vm634, %v636, %v632
  %v638 = vmul.f32 1.0, %v637
  %v639 = vrcp.pop %v608
  %v640 = vmul.f32 %v608, %v639
  %v641 = vsub.f32 1.0, %v640
  %v642 = vmul.f32 %v639, %v641
  %v643 = vadd.f32 %v639, %v642
  %vm644 = vweird.f32 %v608
  %vm645 = vweird.f32 %v639
  %vm646 = vmor %vm644, %vm645
  %v647 = vsel %vm646, %v639, %v643
  %v648 = vand.u32 2147483647, %v608
  %vm649 = vcmp.eq.f32.partialorder %v648, 8.507059e+37
  %v650 = vand.u32 %v608, 2147483648
  %v651 = vor.u32 1.1754944e-38, %v650
  %v652 = vsel %vm649, %v651, %v647
  %v653 = vmul.f32 1.0, %v652
  %v654 = vtanh.pop %v596
  %v655 = vmul.f32 %v638, %v507
  %v656 = vmul.f32 %v623, %v654
  %v657 = vadd.f32 %v655, %v656
  %v658 = vtanh.pop %v657
  %v659 = vmul.f32 %v653, %v658
  %s660 = sadd.s32 %s284, 1
  %p661 = scmp.lt.s32.totalorder %s660, 8
  %s662 = scalar_select %p661, 1, 0
  %v663 = vstv %s662
  %vm664 = vcmp.eq.s32.totalorder %v663, 1
  %v665 = vsel %vm664, %v659, %v506
  %v666 = vsel %vm664, %v657, %v507
  %s667 = scalar_lea.vmem [#allocation4], 64
  %v668 = vld [vmem:[%s667] sm:$0xff]
  %v669 = vld [vmem:[%s667 + $0x8] sm:$0xff]
  %v670 = vld [vmem:[%s667 + $0x10] sm:$0xff]
  %v671 = vld [vmem:[%s667 + $0x18] sm:$0xff]
  %672 = vmatpush.msra.mxu0 %v351
  %673 = vmatpush.msra.mxu0 %v347
  %674 = vmatpush.msra.mxu0 %v343
  %675 = vmatpush.msra.mxu0 %v339
  %676 = vmatpush.msra.mxu0 %v335
  %677 = vmatpush.msra.mxu0 %v331
  %678 = vmatpush.msra.mxu0 %v327
  %679 = vmatpush.msra.mxu0 %v323
  %680 = vmatpush.msra.mxu0 %v319
  %681 = vmatpush.msra.mxu0 %v315
  %682 = vmatpush.msra.mxu0 %v311
  %683 = vmatpush.msra.mxu0 %v307
  %684 = vmatpush.msra.mxu0 %v303
  %685 = vmatpush.msra.mxu0 %v299
  %686 = vmatpush.msra.mxu0 %v295
  %687 = vmatpush.msra.mxu0 %v291
  %688 = vmatmul.f32.gmra.mxu0 %v665
  %v689 = vpop.f32.mrf.mxu0
  %v690 = vadd.f32 0.0, %v689
  %691 = vdwg.mxu0
  %692 = vmatpush.msra.mxu0 %v352
  %693 = vmatpush.msra.mxu0 %v348
  %694 = vmatpush.msra.mxu0 %v344
  %695 = vmatpush.msra.mxu0 %v340
  %696 = vmatpush.msra.mxu0 %v336
  %697 = vmatpush.msra.mxu0 %v332
  %698 = vmatpush.msra.mxu0 %v328
  %699 = vmatpush.msra.mxu0 %v324
  %700 = vmatpush.msra.mxu0 %v320
  %701 = vmatpush.msra.mxu0 %v316
  %702 = vmatpush.msra.mxu0 %v312
  %703 = vmatpush.msra.mxu0 %v308
  %704 = vmatpush.msra.mxu0 %v304
  %705 = vmatpush.msra.mxu0 %v300
  %706 = vmatpush.msra.mxu0 %v296
  %707 = vmatpush.msra.mxu0 %v292
  %708 = vmatmul.f32.gmra.mxu0 %v665
  %v709 = vpop.f32.mrf.mxu0
  %v710 = vadd.f32 0.0, %v709
  %711 = vdwg.mxu0
  %712 = vmatpush.msra.mxu0 %v353
  %713 = vmatpush.msra.mxu0 %v349
  %714 = vmatpush.msra.mxu0 %v345
  %715 = vmatpush.msra.mxu0 %v341
  %716 = vmatpush.msra.mxu0 %v337
  %717 = vmatpush.msra.mxu0 %v333
  %718 = vmatpush.msra.mxu0 %v329
  %719 = vmatpush.msra.mxu0 %v325
  %720 = vmatpush.msra.mxu0 %v321
  %721 = vmatpush.msra.mxu0 %v317
  %722 = vmatpush.msra.mxu0 %v313
  %723 = vmatpush.msra.mxu0 %v309
  %724 = vmatpush.msra.mxu0 %v305
  %725 = vmatpush.msra.mxu0 %v301
  %726 = vmatpush.msra.mxu0 %v297
  %727 = vmatpush.msra.mxu0 %v293
  %728 = vmatmul.f32.gmra.mxu0 %v665
  %v729 = vpop.f32.mrf.mxu0
  %v730 = vadd.f32 0.0, %v729
  %731 = vdwg.mxu0
  %732 = vmatpush.msra.mxu0 %v354
  %733 = vmatpush.msra.mxu0 %v350
  %734 = vmatpush.msra.mxu0 %v346
  %735 = vmatpush.msra.mxu0 %v342
  %736 = vmatpush.msra.mxu0 %v338
  %737 = vmatpush.msra.mxu0 %v334
  %738 = vmatpush.msra.mxu0 %v330
  %739 = vmatpush.msra.mxu0 %v326
  %740 = vmatpush.msra.mxu0 %v322
  %741 = vmatpush.msra.mxu0 %v318
  %742 = vmatpush.msra.mxu0 %v314
  %743 = vmatpush.msra.mxu0 %v310
  %744 = vmatpush.msra.mxu0 %v306
  %745 = vmatpush.msra.mxu0 %v302
  %746 = vmatpush.msra.mxu0 %v298
  %747 = vmatpush.msra.mxu0 %v294
  %748 = vmatmul.f32.gmra.mxu0 %v665
  %v749 = vpop.f32.mrf.mxu0
  %v750 = vadd.f32 0.0, %v749
  %751 = vdwg.mxu0
  %v752 = vadd.f32 %v668, %v690
  %v753 = vadd.f32 %v669, %v710
  %v754 = vadd.f32 %v670, %v730
  %v755 = vadd.f32 %v671, %v750
  %v756 = vxor.u32 %v752, 2147483648
  %v757 = vxor.u32 %v753, 2147483648
  %v758 = vxor.u32 %v754, 2147483648
  %v759 = vmul.f32 %v756, 1.442695
  %v760 = vpow.pop %v759
  %v761 = vmul.f32 %v757, 1.442695
  %v762 = vpow.pop %v761
  %v763 = vmul.f32 %v758, 1.442695
  %v764 = vpow.pop %v763
  %v765 = vadd.f32 %v760, 1.0
  %v766 = vadd.f32 %v762, 1.0
  %v767 = vadd.f32 %v764, 1.0
  %v768 = vrcp.pop %v765
  %v769 = vmul.f32 %v765, %v768
  %v770 = vsub.f32 1.0, %v769
  %v771 = vmul.f32 %v768, %v770
  %v772 = vadd.f32 %v768, %v771
  %vm773 = vweird.f32 %v765
  %vm774 = vweird.f32 %v768
  %vm775 = vmor %vm773, %vm774
  %v776 = vsel %vm775, %v768, %v772
  %v777 = vand.u32 2147483647, %v765
  %vm778 = vcmp.eq.f32.partialorder %v777, 8.507059e+37
  %v779 = vand.u32 %v765, 2147483648
  %v780 = vor.u32 1.1754944e-38, %v779
  %v781 = vsel %vm778, %v780, %v776
  %v782 = vmul.f32 1.0, %v781
  %v783 = vrcp.pop %v766
  %v784 = vmul.f32 %v766, %v783
  %v785 = vsub.f32 1.0, %v784
  %v786 = vmul.f32 %v783, %v785
  %v787 = vadd.f32 %v783, %v786
  %vm788 = vweird.f32 %v766
  %vm789 = vweird.f32 %v783
  %vm790 = vmor %vm788, %vm789
  %v791 = vsel %vm790, %v783, %v787
  %v792 = vand.u32 2147483647, %v766
  %vm793 = vcmp.eq.f32.partialorder %v792, 8.507059e+37
  %v794 = vand.u32 %v766, 2147483648
  %v795 = vor.u32 1.1754944e-38, %v794
  %v796 = vsel %vm793, %v795, %v791
  %v797 = vmul.f32 1.0, %v796
  %v798 = vrcp.pop %v767
  %v799 = vmul.f32 %v767, %v798
  %v800 = vsub.f32 1.0, %v799
  %v801 = vmul.f32 %v798, %v800
  %v802 = vadd.f32 %v798, %v801
  %vm803 = vweird.f32 %v767
  %vm804 = vweird.f32 %v798
  %vm805 = vmor %vm803, %vm804
  %v806 = vsel %vm805, %v798, %v802
  %v807 = vand.u32 2147483647, %v767
  %vm808 = vcmp.eq.f32.partialorder %v807, 8.507059e+37
  %v809 = vand.u32 %v767, 2147483648
  %v810 = vor.u32 1.1754944e-38, %v809
  %v811 = vsel %vm808, %v810, %v806
  %v812 = vmul.f32 1.0, %v811
  %v813 = vtanh.pop %v755
  %v814 = vmul.f32 %v797, %v666
  %v815 = vmul.f32 %v782, %v813
  %v816 = vadd.f32 %v814, %v815
  %v817 = vtanh.pop %v816
  %v818 = vmul.f32 %v812, %v817
  %s819 = sadd.s32 %s284, 2
  %p820 = scmp.lt.s32.totalorder %s819, 8
  %s821 = scalar_select %p820, 1, 0
  %v822 = vstv %s821
  %vm823 = vcmp.eq.s32.totalorder %v822, 1
  %v824 = vsel %vm823, %v818, %v665
  %v825 = vsel %vm823, %v816, %v666
  %s826 = scalar_lea.vmem [#allocation4], 96
  %v827 = vld [vmem:[%s826] sm:$0xff]
  %v828 = vld [vmem:[%s826 + $0x8] sm:$0xff]
  %v829 = vld [vmem:[%s826 + $0x10] sm:$0xff]
  %v830 = vld [vmem:[%s826 + $0x18] sm:$0xff]
  %831 = vmatpush.msra.mxu0 %v351
  %832 = vmatpush.msra.mxu0 %v347
  %833 = vmatpush.msra.mxu0 %v343
  %834 = vmatpush.msra.mxu0 %v339
  %835 = vmatpush.msra.mxu0 %v335
  %836 = vmatpush.msra.mxu0 %v331
  %837 = vmatpush.msra.mxu0 %v327
  %838 = vmatpush.msra.mxu0 %v323
  %839 = vmatpush.msra.mxu0 %v319
  %840 = vmatpush.msra.mxu0 %v315
  %841 = vmatpush.msra.mxu0 %v311
  %842 = vmatpush.msra.mxu0 %v307
  %843 = vmatpush.msra.mxu0 %v303
  %844 = vmatpush.msra.mxu0 %v299
  %845 = vmatpush.msra.mxu0 %v295
  %846 = vmatpush.msra.mxu0 %v291
  %847 = vmatmul.f32.gmra.mxu0 %v824
  %v848 = vpop.f32.mrf.mxu0
  %v849 = vadd.f32 0.0, %v848
  %850 = vdwg.mxu0
  %851 = vmatpush.msra.mxu0 %v352
  %852 = vmatpush.msra.mxu0 %v348
  %853 = vmatpush.msra.mxu0 %v344
  %854 = vmatpush.msra.mxu0 %v340
  %855 = vmatpush.msra.mxu0 %v336
  %856 = vmatpush.msra.mxu0 %v332
  %857 = vmatpush.msra.mxu0 %v328
  %858 = vmatpush.msra.mxu0 %v324
  %859 = vmatpush.msra.mxu0 %v320
  %860 = vmatpush.msra.mxu0 %v316
  %861 = vmatpush.msra.mxu0 %v312
  %862 = vmatpush.msra.mxu0 %v308
  %863 = vmatpush.msra.mxu0 %v304
  %864 = vmatpush.msra.mxu0 %v300
  %865 = vmatpush.msra.mxu0 %v296
  %866 = vmatpush.msra.mxu0 %v292
  %867 = vmatmul.f32.gmra.mxu0 %v824
  %v868 = vpop.f32.mrf.mxu0
  %v869 = vadd.f32 0.0, %v868
  %870 = vdwg.mxu0
  %871 = vmatpush.msra.mxu0 %v353
  %872 = vmatpush.msra.mxu0 %v349
  %873 = vmatpush.msra.mxu0 %v345
  %874 = vmatpush.msra.mxu0 %v341
  %875 = vmatpush.msra.mxu0 %v337
  %876 = vmatpush.msra.mxu0 %v333
  %877 = vmatpush.msra.mxu0 %v329
  %878 = vmatpush.msra.mxu0 %v325
  %879 = vmatpush.msra.mxu0 %v321
  %880 = vmatpush.msra.mxu0 %v317
  %881 = vmatpush.msra.mxu0 %v313
  %882 = vmatpush.msra.mxu0 %v309
  %883 = vmatpush.msra.mxu0 %v305
  %884 = vmatpush.msra.mxu0 %v301
  %885 = vmatpush.msra.mxu0 %v297
  %886 = vmatpush.msra.mxu0 %v293
  %887 = vmatmul.f32.gmra.mxu0 %v824
  %v888 = vpop.f32.mrf.mxu0
  %v889 = vadd.f32 0.0, %v888
  %890 = vdwg.mxu0
  %891 = vmatpush.msra.mxu0 %v354
  %892 = vmatpush.msra.mxu0 %v350
  %893 = vmatpush.msra.mxu0 %v346
  %894 = vmatpush.msra.mxu0 %v342
  %895 = vmatpush.msra.mxu0 %v338
  %896 = vmatpush.msra.mxu0 %v334
  %897 = vmatpush.msra.mxu0 %v330
  %898 = vmatpush.msra.mxu0 %v326
  %899 = vmatpush.msra.mxu0 %v322
  %900 = vmatpush.msra.mxu0 %v318
  %901 = vmatpush.msra.mxu0 %v314
  %902 = vmatpush.msra.mxu0 %v310
  %903 = vmatpush.msra.mxu0 %v306
  %904 = vmatpush.msra.mxu0 %v302
  %905 = vmatpush.msra.mxu0 %v298
  %906 = vmatpush.msra.mxu0 %v294
  %907 = vmatmul.f32.gmra.mxu0 %v824
  %v908 = vpop.f32.mrf.mxu0
  %v909 = vadd.f32 0.0, %v908
  %910 = vdwg.mxu0
  %v911 = vadd.f32 %v827, %v849
  %v912 = vadd.f32 %v828, %v869
  %v913 = vadd.f32 %v829, %v889
  %v914 = vadd.f32 %v830, %v909
  %v915 = vxor.u32 %v911, 2147483648
  %v916 = vxor.u32 %v912, 2147483648
  %v917 = vxor.u32 %v913, 2147483648
  %v918 = vmul.f32 %v915, 1.442695
  %v919 = vpow.pop %v918
  %v920 = vmul.f32 %v916, 1.442695
  %v921 = vpow.pop %v920
  %v922 = vmul.f32 %v917, 1.442695
  %v923 = vpow.pop %v922
  %v924 = vadd.f32 %v919, 1.0
  %v925 = vadd.f32 %v921, 1.0
  %v926 = vadd.f32 %v923, 1.0
  %v927 = vrcp.pop %v924
  %v928 = vmul.f32 %v924, %v927
  %v929 = vsub.f32 1.0, %v928
  %v930 = vmul.f32 %v927, %v929
  %v931 = vadd.f32 %v927, %v930
  %vm932 = vweird.f32 %v924
  %vm933 = vweird.f32 %v927
  %vm934 = vmor %vm932, %vm933
  %v935 = vsel %vm934, %v927, %v931
  %v936 = vand.u32 2147483647, %v924
  %vm937 = vcmp.eq.f32.partialorder %v936, 8.507059e+37
  %v938 = vand.u32 %v924, 2147483648
  %v939 = vor.u32 1.1754944e-38, %v938
  %v940 = vsel %vm937, %v939, %v935
  %v941 = vmul.f32 1.0, %v940
  %v942 = vrcp.pop %v925
  %v943 = vmul.f32 %v925, %v942
  %v944 = vsub.f32 1.0, %v943
  %v945 = vmul.f32 %v942, %v944
  %v946 = vadd.f32 %v942, %v945
  %vm947 = vweird.f32 %v925
  %vm948 = vweird.f32 %v942
  %vm949 = vmor %vm947, %vm948
  %v950 = vsel %vm949, %v942, %v946
  %v951 = vand.u32 2147483647, %v925
  %vm952 = vcmp.eq.f32.partialorder %v951, 8.507059e+37
  %v953 = vand.u32 %v925, 2147483648
  %v954 = vor.u32 1.1754944e-38, %v953
  %v955 = vsel %vm952, %v954, %v950
  %v956 = vmul.f32 1.0, %v955
  %v957 = vrcp.pop %v926
  %v958 = vmul.f32 %v926, %v957
  %v959 = vsub.f32 1.0, %v958
  %v960 = vmul.f32 %v957, %v959
  %v961 = vadd.f32 %v957, %v960
  %vm962 = vweird.f32 %v926
  %vm963 = vweird.f32 %v957
  %vm964 = vmor %vm962, %vm963
  %v965 = vsel %vm964, %v957, %v961
  %v966 = vand.u32 2147483647, %v926
  %vm967 = vcmp.eq.f32.partialorder %v966, 8.507059e+37
  %v968 = vand.u32 %v926, 2147483648
  %v969 = vor.u32 1.1754944e-38, %v968
  %v970 = vsel %vm967, %v969, %v965
  %v971 = vmul.f32 1.0, %v970
  %v972 = vtanh.pop %v914
  %v973 = vmul.f32 %v956, %v825
  %v974 = vmul.f32 %v941, %v972
  %v975 = vadd.f32 %v973, %v974
  %v976 = vtanh.pop %v975
  %v977 = vmul.f32 %v971, %v976
  %s978 = sadd.s32 %s284, 3
  %p979 = scmp.lt.s32.totalorder %s978, 8
  %s980 = scalar_select %p979, 1, 0
  %v981 = vstv %s980
  %vm982 = vcmp.eq.s32.totalorder %v981, 1
  %v983 = vsel %vm982, %v977, %v824
  %v984 = vsel %vm982, %v975, %v825
  %s985 = scalar_lea.vmem [#allocation4], 128
  %v986 = vld [vmem:[%s985] sm:$0xff]
  %v987 = vld [vmem:[%s985 + $0x8] sm:$0xff]
  %v988 = vld [vmem:[%s985 + $0x10] sm:$0xff]
  %v989 = vld [vmem:[%s985 + $0x18] sm:$0xff]
  %990 = vmatpush.msra.mxu0 %v351
  %991 = vmatpush.msra.mxu0 %v347
  %992 = vmatpush.msra.mxu0 %v343
  %993 = vmatpush.msra.mxu0 %v339
  %994 = vmatpush.msra.mxu0 %v335
  %995 = vmatpush.msra.mxu0 %v331
  %996 = vmatpush.msra.mxu0 %v327
  %997 = vmatpush.msra.mxu0 %v323
  %998 = vmatpush.msra.mxu0 %v319
  %999 = vmatpush.msra.mxu0 %v315
  %1000 = vmatpush.msra.mxu0 %v311
  %1001 = vmatpush.msra.mxu0 %v307
  %1002 = vmatpush.msra.mxu0 %v303
  %1003 = vmatpush.msra.mxu0 %v299
  %1004 = vmatpush.msra.mxu0 %v295
  %1005 = vmatpush.msra.mxu0 %v291
  %1006 = vmatmul.f32.gmra.mxu0 %v983
  %v1007 = vpop.f32.mrf.mxu0
  %v1008 = vadd.f32 0.0, %v1007
  %1009 = vdwg.mxu0
  %1010 = vmatpush.msra.mxu0 %v352
  %1011 = vmatpush.msra.mxu0 %v348
  %1012 = vmatpush.msra.mxu0 %v344
  %1013 = vmatpush.msra.mxu0 %v340
  %1014 = vmatpush.msra.mxu0 %v336
  %1015 = vmatpush.msra.mxu0 %v332
  %1016 = vmatpush.msra.mxu0 %v328
  %1017 = vmatpush.msra.mxu0 %v324
  %1018 = vmatpush.msra.mxu0 %v320
  %1019 = vmatpush.msra.mxu0 %v316
  %1020 = vmatpush.msra.mxu0 %v312
  %1021 = vmatpush.msra.mxu0 %v308
  %1022 = vmatpush.msra.mxu0 %v304
  %1023 = vmatpush.msra.mxu0 %v300
  %1024 = vmatpush.msra.mxu0 %v296
  %1025 = vmatpush.msra.mxu0 %v292
  %1026 = vmatmul.f32.gmra.mxu0 %v983
  %v1027 = vpop.f32.mrf.mxu0
  %v1028 = vadd.f32 0.0, %v1027
  %1029 = vdwg.mxu0
  %1030 = vmatpush.msra.mxu0 %v353
  %1031 = vmatpush.msra.mxu0 %v349
  %1032 = vmatpush.msra.mxu0 %v345
  %1033 = vmatpush.msra.mxu0 %v341
  %1034 = vmatpush.msra.mxu0 %v337
  %1035 = vmatpush.msra.mxu0 %v333
  %1036 = vmatpush.msra.mxu0 %v329
  %1037 = vmatpush.msra.mxu0 %v325
  %1038 = vmatpush.msra.mxu0 %v321
  %1039 = vmatpush.msra.mxu0 %v317
  %1040 = vmatpush.msra.mxu0 %v313
  %1041 = vmatpush.msra.mxu0 %v309
  %1042 = vmatpush.msra.mxu0 %v305
  %1043 = vmatpush.msra.mxu0 %v301
  %1044 = vmatpush.msra.mxu0 %v297
  %1045 = vmatpush.msra.mxu0 %v293
  %1046 = vmatmul.f32.gmra.mxu0 %v983
  %v1047 = vpop.f32.mrf.mxu0
  %v1048 = vadd.f32 0.0, %v1047
  %1049 = vdwg.mxu0
  %1050 = vmatpush.msra.mxu0 %v354
  %1051 = vmatpush.msra.mxu0 %v350
  %1052 = vmatpush.msra.mxu0 %v346
  %1053 = vmatpush.msra.mxu0 %v342
  %1054 = vmatpush.msra.mxu0 %v338
  %1055 = vmatpush.msra.mxu0 %v334
  %1056 = vmatpush.msra.mxu0 %v330
  %1057 = vmatpush.msra.mxu0 %v326
  %1058 = vmatpush.msra.mxu0 %v322
  %1059 = vmatpush.msra.mxu0 %v318
  %1060 = vmatpush.msra.mxu0 %v314
  %1061 = vmatpush.msra.mxu0 %v310
  %1062 = vmatpush.msra.mxu0 %v306
  %1063 = vmatpush.msra.mxu0 %v302
  %1064 = vmatpush.msra.mxu0 %v298
  %1065 = vmatpush.msra.mxu0 %v294
  %1066 = vmatmul.f32.gmra.mxu0 %v983
  %v1067 = vpop.f32.mrf.mxu0
  %v1068 = vadd.f32 0.0, %v1067
  %1069 = vdwg.mxu0
  %v1070 = vadd.f32 %v986, %v1008
  %v1071 = vadd.f32 %v987, %v1028
  %v1072 = vadd.f32 %v988, %v1048
  %v1073 = vadd.f32 %v989, %v1068
  %v1074 = vxor.u32 %v1070, 2147483648
  %v1075 = vxor.u32 %v1071, 2147483648
  %v1076 = vxor.u32 %v1072, 2147483648
  %v1077 = vmul.f32 %v1074, 1.442695
  %v1078 = vpow.pop %v1077
  %v1079 = vmul.f32 %v1075, 1.442695
  %v1080 = vpow.pop %v1079
  %v1081 = vmul.f32 %v1076, 1.442695
  %v1082 = vpow.pop %v1081
  %v1083 = vadd.f32 %v1078, 1.0
  %v1084 = vadd.f32 %v1080, 1.0
  %v1085 = vadd.f32 %v1082, 1.0
  %v1086 = vrcp.pop %v1083
  %v1087 = vmul.f32 %v1083, %v1086
  %v1088 = vsub.f32 1.0, %v1087
  %v1089 = vmul.f32 %v1086, %v1088
  %v1090 = vadd.f32 %v1086, %v1089
  %vm1091 = vweird.f32 %v1083
  %vm1092 = vweird.f32 %v1086
  %vm1093 = vmor %vm1091, %vm1092
  %v1094 = vsel %vm1093, %v1086, %v1090
  %v1095 = vand.u32 2147483647, %v1083
  %vm1096 = vcmp.eq.f32.partialorder %v1095, 8.507059e+37
  %v1097 = vand.u32 %v1083, 2147483648
  %v1098 = vor.u32 1.1754944e-38, %v1097
  %v1099 = vsel %vm1096, %v1098, %v1094
  %v1100 = vmul.f32 1.0, %v1099
  %v1101 = vrcp.pop %v1084
  %v1102 = vmul.f32 %v1084, %v1101
  %v1103 = vsub.f32 1.0, %v1102
  %v1104 = vmul.f32 %v1101, %v1103
  %v1105 = vadd.f32 %v1101, %v1104
  %vm1106 = vweird.f32 %v1084
  %vm1107 = vweird.f32 %v1101
  %vm1108 = vmor %vm1106, %vm1107
  %v1109 = vsel %vm1108, %v1101, %v1105
  %v1110 = vand.u32 2147483647, %v1084
  %vm1111 = vcmp.eq.f32.partialorder %v1110, 8.507059e+37
  %v1112 = vand.u32 %v1084, 2147483648
  %v1113 = vor.u32 1.1754944e-38, %v1112
  %v1114 = vsel %vm1111, %v1113, %v1109
  %v1115 = vmul.f32 1.0, %v1114
  %v1116 = vrcp.pop %v1085
  %v1117 = vmul.f32 %v1085, %v1116
  %v1118 = vsub.f32 1.0, %v1117
  %v1119 = vmul.f32 %v1116, %v1118
  %v1120 = vadd.f32 %v1116, %v1119
  %vm1121 = vweird.f32 %v1085
  %vm1122 = vweird.f32 %v1116
  %vm1123 = vmor %vm1121, %vm1122
  %v1124 = vsel %vm1123, %v1116, %v1120
  %v1125 = vand.u32 2147483647, %v1085
  %vm1126 = vcmp.eq.f32.partialorder %v1125, 8.507059e+37
  %v1127 = vand.u32 %v1085, 2147483648
  %v1128 = vor.u32 1.1754944e-38, %v1127
  %v1129 = vsel %vm1126, %v1128, %v1124
  %v1130 = vmul.f32 1.0, %v1129
  %v1131 = vtanh.pop %v1073
  %v1132 = vmul.f32 %v1115, %v984
  %v1133 = vmul.f32 %v1100, %v1131
  %v1134 = vadd.f32 %v1132, %v1133
  %v1135 = vtanh.pop %v1134
  %v1136 = vmul.f32 %v1130, %v1135
  %s1137 = sadd.s32 %s284, 4
  %p1138 = scmp.lt.s32.totalorder %s1137, 8
  %s1139 = scalar_select %p1138, 1, 0
  %v1140 = vstv %s1139
  %vm1141 = vcmp.eq.s32.totalorder %v1140, 1
  %v1142 = vsel %vm1141, %v1136, %v983
  %v1143 = vsel %vm1141, %v1134, %v984
  %s1144 = scalar_lea.vmem [#allocation4], 160
  %v1145 = vld [vmem:[%s1144] sm:$0xff]
  %v1146 = vld [vmem:[%s1144 + $0x8] sm:$0xff]
  %v1147 = vld [vmem:[%s1144 + $0x10] sm:$0xff]
  %v1148 = vld [vmem:[%s1144 + $0x18] sm:$0xff]
  %1149 = vmatpush.msra.mxu0 %v351
  %1150 = vmatpush.msra.mxu0 %v347
  %1151 = vmatpush.msra.mxu0 %v343
  %1152 = vmatpush.msra.mxu0 %v339
  %1153 = vmatpush.msra.mxu0 %v335
  %1154 = vmatpush.msra.mxu0 %v331
  %1155 = vmatpush.msra.mxu0 %v327
  %1156 = vmatpush.msra.mxu0 %v323
  %1157 = vmatpush.msra.mxu0 %v319
  %1158 = vmatpush.msra.mxu0 %v315
  %1159 = vmatpush.msra.mxu0 %v311
  %1160 = vmatpush.msra.mxu0 %v307
  %1161 = vmatpush.msra.mxu0 %v303
  %1162 = vmatpush.msra.mxu0 %v299
  %1163 = vmatpush.msra.mxu0 %v295
  %1164 = vmatpush.msra.mxu0 %v291
  %1165 = vmatmul.f32.gmra.mxu0 %v1142
  %v1166 = vpop.f32.mrf.mxu0
  %v1167 = vadd.f32 0.0, %v1166
  %1168 = vdwg.mxu0
  %1169 = vmatpush.msra.mxu0 %v352
  %1170 = vmatpush.msra.mxu0 %v348
  %1171 = vmatpush.msra.mxu0 %v344
  %1172 = vmatpush.msra.mxu0 %v340
  %1173 = vmatpush.msra.mxu0 %v336
  %1174 = vmatpush.msra.mxu0 %v332
  %1175 = vmatpush.msra.mxu0 %v328
  %1176 = vmatpush.msra.mxu0 %v324
  %1177 = vmatpush.msra.mxu0 %v320
  %1178 = vmatpush.msra.mxu0 %v316
  %1179 = vmatpush.msra.mxu0 %v312
  %1180 = vmatpush.msra.mxu0 %v308
  %1181 = vmatpush.msra.mxu0 %v304
  %1182 = vmatpush.msra.mxu0 %v300
  %1183 = vmatpush.msra.mxu0 %v296
  %1184 = vmatpush.msra.mxu0 %v292
  %1185 = vmatmul.f32.gmra.mxu0 %v1142
  %v1186 = vpop.f32.mrf.mxu0
  %v1187 = vadd.f32 0.0, %v1186
  %1188 = vdwg.mxu0
  %1189 = vmatpush.msra.mxu0 %v353
  %1190 = vmatpush.msra.mxu0 %v349
  %1191 = vmatpush.msra.mxu0 %v345
  %1192 = vmatpush.msra.mxu0 %v341
  %1193 = vmatpush.msra.mxu0 %v337
  %1194 = vmatpush.msra.mxu0 %v333
  %1195 = vmatpush.msra.mxu0 %v329
  %1196 = vmatpush.msra.mxu0 %v325
  %1197 = vmatpush.msra.mxu0 %v321
  %1198 = vmatpush.msra.mxu0 %v317
  %1199 = vmatpush.msra.mxu0 %v313
  %1200 = vmatpush.msra.mxu0 %v309
  %1201 = vmatpush.msra.mxu0 %v305
  %1202 = vmatpush.msra.mxu0 %v301
  %1203 = vmatpush.msra.mxu0 %v297
  %1204 = vmatpush.msra.mxu0 %v293
  %1205 = vmatmul.f32.gmra.mxu0 %v1142
  %v1206 = vpop.f32.mrf.mxu0
  %v1207 = vadd.f32 0.0, %v1206
  %1208 = vdwg.mxu0
  %1209 = vmatpush.msra.mxu0 %v354
  %1210 = vmatpush.msra.mxu0 %v350
  %1211 = vmatpush.msra.mxu0 %v346
  %1212 = vmatpush.msra.mxu0 %v342
  %1213 = vmatpush.msra.mxu0 %v338
  %1214 = vmatpush.msra.mxu0 %v334
  %1215 = vmatpush.msra.mxu0 %v330
  %1216 = vmatpush.msra.mxu0 %v326
  %1217 = vmatpush.msra.mxu0 %v322
  %1218 = vmatpush.msra.mxu0 %v318
  %1219 = vmatpush.msra.mxu0 %v314
  %1220 = vmatpush.msra.mxu0 %v310
  %1221 = vmatpush.msra.mxu0 %v306
  %1222 = vmatpush.msra.mxu0 %v302
  %1223 = vmatpush.msra.mxu0 %v298
  %1224 = vmatpush.msra.mxu0 %v294
  %1225 = vmatmul.f32.gmra.mxu0 %v1142
  %v1226 = vpop.f32.mrf.mxu0
  %v1227 = vadd.f32 0.0, %v1226
  %1228 = vdwg.mxu0
  %v1229 = vadd.f32 %v1145, %v1167
  %v1230 = vadd.f32 %v1146, %v1187
  %v1231 = vadd.f32 %v1147, %v1207
  %v1232 = vadd.f32 %v1148, %v1227
  %v1233 = vxor.u32 %v1229, 2147483648
  %v1234 = vxor.u32 %v1230, 2147483648
  %v1235 = vxor.u32 %v1231, 2147483648
  %v1236 = vmul.f32 %v1233, 1.442695
  %v1237 = vpow.pop %v1236
  %v1238 = vmul.f32 %v1234, 1.442695
  %v1239 = vpow.pop %v1238
  %v1240 = vmul.f32 %v1235, 1.442695
  %v1241 = vpow.pop %v1240
  %v1242 = vadd.f32 %v1237, 1.0
  %v1243 = vadd.f32 %v1239, 1.0
  %v1244 = vadd.f32 %v1241, 1.0
  %v1245 = vrcp.pop %v1242
  %v1246 = vmul.f32 %v1242, %v1245
  %v1247 = vsub.f32 1.0, %v1246
  %v1248 = vmul.f32 %v1245, %v1247
  %v1249 = vadd.f32 %v1245, %v1248
  %vm1250 = vweird.f32 %v1242
  %vm1251 = vweird.f32 %v1245
  %vm1252 = vmor %vm1250, %vm1251
  %v1253 = vsel %vm1252, %v1245, %v1249
  %v1254 = vand.u32 2147483647, %v1242
  %vm1255 = vcmp.eq.f32.partialorder %v1254, 8.507059e+37
  %v1256 = vand.u32 %v1242, 2147483648
  %v1257 = vor.u32 1.1754944e-38, %v1256
  %v1258 = vsel %vm1255, %v1257, %v1253
  %v1259 = vmul.f32 1.0, %v1258
  %v1260 = vrcp.pop %v1243
  %v1261 = vmul.f32 %v1243, %v1260
  %v1262 = vsub.f32 1.0, %v1261
  %v1263 = vmul.f32 %v1260, %v1262
  %v1264 = vadd.f32 %v1260, %v1263
  %vm1265 = vweird.f32 %v1243
  %vm1266 = vweird.f32 %v1260
  %vm1267 = vmor %vm1265, %vm1266
  %v1268 = vsel %vm1267, %v1260, %v1264
  %v1269 = vand.u32 2147483647, %v1243
  %vm1270 = vcmp.eq.f32.partialorder %v1269, 8.507059e+37
  %v1271 = vand.u32 %v1243, 2147483648
  %v1272 = vor.u32 1.1754944e-38, %v1271
  %v1273 = vsel %vm1270, %v1272, %v1268
  %v1274 = vmul.f32 1.0, %v1273
  %v1275 = vrcp.pop %v1244
  %v1276 = vmul.f32 %v1244, %v1275
  %v1277 = vsub.f32 1.0, %v1276
  %v1278 = vmul.f32 %v1275, %v1277
  %v1279 = vadd.f32 %v1275, %v1278
  %vm1280 = vweird.f32 %v1244
  %vm1281 = vweird.f32 %v1275
  %vm1282 = vmor %vm1280, %vm1281
  %v1283 = vsel %vm1282, %v1275, %v1279
  %v1284 = vand.u32 2147483647, %v1244
  %vm1285 = vcmp.eq.f32.partialorder %v1284, 8.507059e+37
  %v1286 = vand.u32 %v1244, 2147483648
  %v1287 = vor.u32 1.1754944e-38, %v1286
  %v1288 = vsel %vm1285, %v1287, %v1283
  %v1289 = vmul.f32 1.0, %v1288
  %v1290 = vtanh.pop %v1232
  %v1291 = vmul.f32 %v1274, %v1143
  %v1292 = vmul.f32 %v1259, %v1290
  %v1293 = vadd.f32 %v1291, %v1292
  %v1294 = vtanh.pop %v1293
  %v1295 = vmul.f32 %v1289, %v1294
  %s1296 = sadd.s32 %s284, 5
  %p1297 = scmp.lt.s32.totalorder %s1296, 8
  %s1298 = scalar_select %p1297, 1, 0
  %v1299 = vstv %s1298
  %vm1300 = vcmp.eq.s32.totalorder %v1299, 1
  %v1301 = vsel %vm1300, %v1295, %v1142
  %v1302 = vsel %vm1300, %v1293, %v1143
  %s1303 = scalar_lea.vmem [#allocation4], 192
  %v1304 = vld [vmem:[%s1303] sm:$0xff]
  %v1305 = vld [vmem:[%s1303 + $0x8] sm:$0xff]
  %v1306 = vld [vmem:[%s1303 + $0x10] sm:$0xff]
  %v1307 = vld [vmem:[%s1303 + $0x18] sm:$0xff]
  %1308 = vmatpush.msra.mxu0 %v351
  %1309 = vmatpush.msra.mxu0 %v347
  %1310 = vmatpush.msra.mxu0 %v343
  %1311 = vmatpush.msra.mxu0 %v339
  %1312 = vmatpush.msra.mxu0 %v335
  %1313 = vmatpush.msra.mxu0 %v331
  %1314 = vmatpush.msra.mxu0 %v327
  %1315 = vmatpush.msra.mxu0 %v323
  %1316 = vmatpush.msra.mxu0 %v319
  %1317 = vmatpush.msra.mxu0 %v315
  %1318 = vmatpush.msra.mxu0 %v311
  %1319 = vmatpush.msra.mxu0 %v307
  %1320 = vmatpush.msra.mxu0 %v303
  %1321 = vmatpush.msra.mxu0 %v299
  %1322 = vmatpush.msra.mxu0 %v295
  %1323 = vmatpush.msra.mxu0 %v291
  %1324 = vmatmul.f32.gmra.mxu0 %v1301
  %v1325 = vpop.f32.mrf.mxu0
  %v1326 = vadd.f32 0.0, %v1325
  %1327 = vdwg.mxu0
  %1328 = vmatpush.msra.mxu0 %v352
  %1329 = vmatpush.msra.mxu0 %v348
  %1330 = vmatpush.msra.mxu0 %v344
  %1331 = vmatpush.msra.mxu0 %v340
  %1332 = vmatpush.msra.mxu0 %v336
  %1333 = vmatpush.msra.mxu0 %v332
  %1334 = vmatpush.msra.mxu0 %v328
  %1335 = vmatpush.msra.mxu0 %v324
  %1336 = vmatpush.msra.mxu0 %v320
  %1337 = vmatpush.msra.mxu0 %v316
  %1338 = vmatpush.msra.mxu0 %v312
  %1339 = vmatpush.msra.mxu0 %v308
  %1340 = vmatpush.msra.mxu0 %v304
  %1341 = vmatpush.msra.mxu0 %v300
  %1342 = vmatpush.msra.mxu0 %v296
  %1343 = vmatpush.msra.mxu0 %v292
  %1344 = vmatmul.f32.gmra.mxu0 %v1301
  %v1345 = vpop.f32.mrf.mxu0
  %v1346 = vadd.f32 0.0, %v1345
  %1347 = vdwg.mxu0
  %1348 = vmatpush.msra.mxu0 %v353
  %1349 = vmatpush.msra.mxu0 %v349
  %1350 = vmatpush.msra.mxu0 %v345
  %1351 = vmatpush.msra.mxu0 %v341
  %1352 = vmatpush.msra.mxu0 %v337
  %1353 = vmatpush.msra.mxu0 %v333
  %1354 = vmatpush.msra.mxu0 %v329
  %1355 = vmatpush.msra.mxu0 %v325
  %1356 = vmatpush.msra.mxu0 %v321
  %1357 = vmatpush.msra.mxu0 %v317
  %1358 = vmatpush.msra.mxu0 %v313
  %1359 = vmatpush.msra.mxu0 %v309
  %1360 = vmatpush.msra.mxu0 %v305
  %1361 = vmatpush.msra.mxu0 %v301
  %1362 = vmatpush.msra.mxu0 %v297
  %1363 = vmatpush.msra.mxu0 %v293
  %1364 = vmatmul.f32.gmra.mxu0 %v1301
  %v1365 = vpop.f32.mrf.mxu0
  %v1366 = vadd.f32 0.0, %v1365
  %1367 = vdwg.mxu0
  %1368 = vmatpush.msra.mxu0 %v354
  %1369 = vmatpush.msra.mxu0 %v350
  %1370 = vmatpush.msra.mxu0 %v346
  %1371 = vmatpush.msra.mxu0 %v342
  %1372 = vmatpush.msra.mxu0 %v338
  %1373 = vmatpush.msra.mxu0 %v334
  %1374 = vmatpush.msra.mxu0 %v330
  %1375 = vmatpush.msra.mxu0 %v326
  %1376 = vmatpush.msra.mxu0 %v322
  %1377 = vmatpush.msra.mxu0 %v318
  %1378 = vmatpush.msra.mxu0 %v314
  %1379 = vmatpush.msra.mxu0 %v310
  %1380 = vmatpush.msra.mxu0 %v306
  %1381 = vmatpush.msra.mxu0 %v302
  %1382 = vmatpush.msra.mxu0 %v298
  %1383 = vmatpush.msra.mxu0 %v294
  %1384 = vmatmul.f32.gmra.mxu0 %v1301
  %v1385 = vpop.f32.mrf.mxu0
  %v1386 = vadd.f32 0.0, %v1385
  %1387 = vdwg.mxu0
  %v1388 = vadd.f32 %v1304, %v1326
  %v1389 = vadd.f32 %v1305, %v1346
  %v1390 = vadd.f32 %v1306, %v1366
  %v1391 = vadd.f32 %v1307, %v1386
  %v1392 = vxor.u32 %v1388, 2147483648
  %v1393 = vxor.u32 %v1389, 2147483648
  %v1394 = vxor.u32 %v1390, 2147483648
  %v1395 = vmul.f32 %v1392, 1.442695
  %v1396 = vpow.pop %v1395
  %v1397 = vmul.f32 %v1393, 1.442695
  %v1398 = vpow.pop %v1397
  %v1399 = vmul.f32 %v1394, 1.442695
  %v1400 = vpow.pop %v1399
  %v1401 = vadd.f32 %v1396, 1.0
  %v1402 = vadd.f32 %v1398, 1.0
  %v1403 = vadd.f32 %v1400, 1.0
  %v1404 = vrcp.pop %v1401
  %v1405 = vmul.f32 %v1401, %v1404
  %v1406 = vsub.f32 1.0, %v1405
  %v1407 = vmul.f32 %v1404, %v1406
  %v1408 = vadd.f32 %v1404, %v1407
  %vm1409 = vweird.f32 %v1401
  %vm1410 = vweird.f32 %v1404
  %vm1411 = vmor %vm1409, %vm1410
  %v1412 = vsel %vm1411, %v1404, %v1408
  %v1413 = vand.u32 2147483647, %v1401
  %vm1414 = vcmp.eq.f32.partialorder %v1413, 8.507059e+37
  %v1415 = vand.u32 %v1401, 2147483648
  %v1416 = vor.u32 1.1754944e-38, %v1415
  %v1417 = vsel %vm1414, %v1416, %v1412
  %v1418 = vmul.f32 1.0, %v1417
  %v1419 = vrcp.pop %v1402
  %v1420 = vmul.f32 %v1402, %v1419
  %v1421 = vsub.f32 1.0, %v1420
  %v1422 = vmul.f32 %v1419, %v1421
  %v1423 = vadd.f32 %v1419, %v1422
  %vm1424 = vweird.f32 %v1402
  %vm1425 = vweird.f32 %v1419
  %vm1426 = vmor %vm1424, %vm1425
  %v1427 = vsel %vm1426, %v1419, %v1423
  %v1428 = vand.u32 2147483647, %v1402
  %vm1429 = vcmp.eq.f32.partialorder %v1428, 8.507059e+37
  %v1430 = vand.u32 %v1402, 2147483648
  %v1431 = vor.u32 1.1754944e-38, %v1430
  %v1432 = vsel %vm1429, %v1431, %v1427
  %v1433 = vmul.f32 1.0, %v1432
  %v1434 = vrcp.pop %v1403
  %v1435 = vmul.f32 %v1403, %v1434
  %v1436 = vsub.f32 1.0, %v1435
  %v1437 = vmul.f32 %v1434, %v1436
  %v1438 = vadd.f32 %v1434, %v1437
  %vm1439 = vweird.f32 %v1403
  %vm1440 = vweird.f32 %v1434
  %vm1441 = vmor %vm1439, %vm1440
  %v1442 = vsel %vm1441, %v1434, %v1438
  %v1443 = vand.u32 2147483647, %v1403
  %vm1444 = vcmp.eq.f32.partialorder %v1443, 8.507059e+37
  %v1445 = vand.u32 %v1403, 2147483648
  %v1446 = vor.u32 1.1754944e-38, %v1445
  %v1447 = vsel %vm1444, %v1446, %v1442
  %v1448 = vmul.f32 1.0, %v1447
  %v1449 = vtanh.pop %v1391
  %v1450 = vmul.f32 %v1433, %v1302
  %v1451 = vmul.f32 %v1418, %v1449
  %v1452 = vadd.f32 %v1450, %v1451
  %v1453 = vtanh.pop %v1452
  %v1454 = vmul.f32 %v1448, %v1453
  %s1455 = sadd.s32 %s284, 6
  %p1456 = scmp.lt.s32.totalorder %s1455, 8
  %s1457 = scalar_select %p1456, 1, 0
  %v1458 = vstv %s1457
  %vm1459 = vcmp.eq.s32.totalorder %v1458, 1
  %v1460 = vsel %vm1459, %v1454, %v1301
  %v1461 = vsel %vm1459, %v1452, %v1302
  %s1462 = scalar_lea.vmem [#allocation4], 224
  %v1463 = vld [vmem:[%s1462] sm:$0xff]
  %v1464 = vld [vmem:[%s1462 + $0x8] sm:$0xff]
  %v1465 = vld [vmem:[%s1462 + $0x10] sm:$0xff]
  %v1466 = vld [vmem:[%s1462 + $0x18] sm:$0xff]
  %1467 = vmatpush.msra.mxu0 %v351
  %1468 = vmatpush.msra.mxu0 %v347
  %1469 = vmatpush.msra.mxu0 %v343
  %1470 = vmatpush.msra.mxu0 %v339
  %1471 = vmatpush.msra.mxu0 %v335
  %1472 = vmatpush.msra.mxu0 %v331
  %1473 = vmatpush.msra.mxu0 %v327
  %1474 = vmatpush.msra.mxu0 %v323
  %1475 = vmatpush.msra.mxu0 %v319
  %1476 = vmatpush.msra.mxu0 %v315
  %1477 = vmatpush.msra.mxu0 %v311
  %1478 = vmatpush.msra.mxu0 %v307
  %1479 = vmatpush.msra.mxu0 %v303
  %1480 = vmatpush.msra.mxu0 %v299
  %1481 = vmatpush.msra.mxu0 %v295
  %1482 = vmatpush.msra.mxu0 %v291
  %1483 = vmatmul.f32.gmra.mxu0 %v1460
  %v1484 = vpop.f32.mrf.mxu0
  %v1485 = vadd.f32 0.0, %v1484
  %1486 = vdwg.mxu0
  %1487 = vmatpush.msra.mxu0 %v352
  %1488 = vmatpush.msra.mxu0 %v348
  %1489 = vmatpush.msra.mxu0 %v344
  %1490 = vmatpush.msra.mxu0 %v340
  %1491 = vmatpush.msra.mxu0 %v336
  %1492 = vmatpush.msra.mxu0 %v332
  %1493 = vmatpush.msra.mxu0 %v328
  %1494 = vmatpush.msra.mxu0 %v324
  %1495 = vmatpush.msra.mxu0 %v320
  %1496 = vmatpush.msra.mxu0 %v316
  %1497 = vmatpush.msra.mxu0 %v312
  %1498 = vmatpush.msra.mxu0 %v308
  %1499 = vmatpush.msra.mxu0 %v304
  %1500 = vmatpush.msra.mxu0 %v300
  %1501 = vmatpush.msra.mxu0 %v296
  %1502 = vmatpush.msra.mxu0 %v292
  %1503 = vmatmul.f32.gmra.mxu0 %v1460
  %v1504 = vpop.f32.mrf.mxu0
  %v1505 = vadd.f32 0.0, %v1504
  %1506 = vdwg.mxu0
  %1507 = vmatpush.msra.mxu0 %v353
  %1508 = vmatpush.msra.mxu0 %v349
  %1509 = vmatpush.msra.mxu0 %v345
  %1510 = vmatpush.msra.mxu0 %v341
  %1511 = vmatpush.msra.mxu0 %v337
  %1512 = vmatpush.msra.mxu0 %v333
  %1513 = vmatpush.msra.mxu0 %v329
  %1514 = vmatpush.msra.mxu0 %v325
  %1515 = vmatpush.msra.mxu0 %v321
  %1516 = vmatpush.msra.mxu0 %v317
  %1517 = vmatpush.msra.mxu0 %v313
  %1518 = vmatpush.msra.mxu0 %v309
  %1519 = vmatpush.msra.mxu0 %v305
  %1520 = vmatpush.msra.mxu0 %v301
  %1521 = vmatpush.msra.mxu0 %v297
  %1522 = vmatpush.msra.mxu0 %v293
  %1523 = vmatmul.f32.gmra.mxu0 %v1460
  %v1524 = vpop.f32.mrf.mxu0
  %v1525 = vadd.f32 0.0, %v1524
  %1526 = vdwg.mxu0
  %1527 = vmatpush.msra.mxu0 %v354
  %1528 = vmatpush.msra.mxu0 %v350
  %1529 = vmatpush.msra.mxu0 %v346
  %1530 = vmatpush.msra.mxu0 %v342
  %1531 = vmatpush.msra.mxu0 %v338
  %1532 = vmatpush.msra.mxu0 %v334
  %1533 = vmatpush.msra.mxu0 %v330
  %1534 = vmatpush.msra.mxu0 %v326
  %1535 = vmatpush.msra.mxu0 %v322
  %1536 = vmatpush.msra.mxu0 %v318
  %1537 = vmatpush.msra.mxu0 %v314
  %1538 = vmatpush.msra.mxu0 %v310
  %1539 = vmatpush.msra.mxu0 %v306
  %1540 = vmatpush.msra.mxu0 %v302
  %1541 = vmatpush.msra.mxu0 %v298
  %1542 = vmatpush.msra.mxu0 %v294
  %1543 = vmatmul.f32.gmra.mxu0 %v1460
  %v1544 = vpop.f32.mrf.mxu0
  %v1545 = vadd.f32 0.0, %v1544
  %1546 = vdwg.mxu0
  %v1547 = vadd.f32 %v1463, %v1485
  %v1548 = vadd.f32 %v1464, %v1505
  %v1549 = vadd.f32 %v1465, %v1525
  %v1550 = vadd.f32 %v1466, %v1545
  %v1551 = vxor.u32 %v1547, 2147483648
  %v1552 = vxor.u32 %v1548, 2147483648
  %v1553 = vxor.u32 %v1549, 2147483648
  %v1554 = vmul.f32 %v1551, 1.442695
  %v1555 = vpow.pop %v1554
  %v1556 = vmul.f32 %v1552, 1.442695
  %v1557 = vpow.pop %v1556
  %v1558 = vmul.f32 %v1553, 1.442695
  %v1559 = vpow.pop %v1558
  %v1560 = vadd.f32 %v1555, 1.0
  %v1561 = vadd.f32 %v1557, 1.0
  %v1562 = vadd.f32 %v1559, 1.0
  %v1563 = vrcp.pop %v1560
  %v1564 = vmul.f32 %v1560, %v1563
  %v1565 = vsub.f32 1.0, %v1564
  %v1566 = vmul.f32 %v1563, %v1565
  %v1567 = vadd.f32 %v1563, %v1566
  %vm1568 = vweird.f32 %v1560
  %vm1569 = vweird.f32 %v1563
  %vm1570 = vmor %vm1568, %vm1569
  %v1571 = vsel %vm1570, %v1563, %v1567
  %v1572 = vand.u32 2147483647, %v1560
  %vm1573 = vcmp.eq.f32.partialorder %v1572, 8.507059e+37
  %v1574 = vand.u32 %v1560, 2147483648
  %v1575 = vor.u32 1.1754944e-38, %v1574
  %v1576 = vsel %vm1573, %v1575, %v1571
  %v1577 = vmul.f32 1.0, %v1576
  %v1578 = vrcp.pop %v1561
  %v1579 = vmul.f32 %v1561, %v1578
  %v1580 = vsub.f32 1.0, %v1579
  %v1581 = vmul.f32 %v1578, %v1580
  %v1582 = vadd.f32 %v1578, %v1581
  %vm1583 = vweird.f32 %v1561
  %vm1584 = vweird.f32 %v1578
  %vm1585 = vmor %vm1583, %vm1584
  %v1586 = vsel %vm1585, %v1578, %v1582
  %v1587 = vand.u32 2147483647, %v1561
  %vm1588 = vcmp.eq.f32.partialorder %v1587, 8.507059e+37
  %v1589 = vand.u32 %v1561, 2147483648
  %v1590 = vor.u32 1.1754944e-38, %v1589
  %v1591 = vsel %vm1588, %v1590, %v1586
  %v1592 = vmul.f32 1.0, %v1591
  %v1593 = vrcp.pop %v1562
  %v1594 = vmul.f32 %v1562, %v1593
  %v1595 = vsub.f32 1.0, %v1594
  %v1596 = vmul.f32 %v1593, %v1595
  %v1597 = vadd.f32 %v1593, %v1596
  %vm1598 = vweird.f32 %v1562
  %vm1599 = vweird.f32 %v1593
  %vm1600 = vmor %vm1598, %vm1599
  %v1601 = vsel %vm1600, %v1593, %v1597
  %v1602 = vand.u32 2147483647, %v1562
  %vm1603 = vcmp.eq.f32.partialorder %v1602, 8.507059e+37
  %v1604 = vand.u32 %v1562, 2147483648
  %v1605 = vor.u32 1.1754944e-38, %v1604
  %v1606 = vsel %vm1603, %v1605, %v1601
  %v1607 = vmul.f32 1.0, %v1606
  %v1608 = vtanh.pop %v1550
  %v1609 = vmul.f32 %v1592, %v1461
  %v1610 = vmul.f32 %v1577, %v1608
  %v1611 = vadd.f32 %v1609, %v1610
  %v1612 = vtanh.pop %v1611
  %v1613 = vmul.f32 %v1607, %v1612
  %s1614 = sadd.s32 %s284, 7
  %p1615 = scmp.lt.s32.totalorder %s1614, 8
  %s1616 = scalar_select %p1615, 1, 0
  %v1617 = vstv %s1616
  %vm1618 = vcmp.eq.s32.totalorder %v1617, 1
  %v1619 = vsel %vm1618, %v1613, %v1460
  %v1620 = vsel %vm1618, %v1611, %v1461
  %1621 = vst [vmem:[#allocation2] sm:$0xff] %v1619
  %1622 = vst [vmem:[#allocation3] sm:$0xff] %v1620
  // Predicated region
  $region30: #{sentiment_forward.1} parent=0 // pred_check
    %p1623 = pneg %p23
  $region31: #{sentiment_forward.1} parent=0 // pred_check_branch
    %1625 = sbr.rel (%p1623) target = $region33
  $region32: #{sentiment_forward.1} parent=0 // pred_region
    %v1626 = vld [vmem:[%s4] sm:$0xff]
    %v1627 = vld [vmem:[%s4 + $0x8] sm:$0xff]
    %v1628 = vld [vmem:[%s4 + $0x10] sm:$0xff]
    %v1629 = vld [vmem:[%s4 + $0x18] sm:$0xff]
    %v1630 = vld [vmem:[%s4 + $0x20] sm:$0xff]
    %v1631 = vld [vmem:[%s4 + $0x28] sm:$0xff]
    %v1632 = vld [vmem:[%s4 + $0x30] sm:$0xff]
    %v1633 = vld [vmem:[%s4 + $0x38] sm:$0xff]
    %v1634 = vld [vmem:[%s4 + $0x40] sm:$0xff]
    %v1635 = vld [vmem:[%s4 + $0x48] sm:$0xff]
    %v1636 = vld [vmem:[%s4 + $0x50] sm:$0xff]
    %v1637 = vld [vmem:[%s4 + $0x58] sm:$0xff]
    %v1638 = vld [vmem:[%s4 + $0x60] sm:$0xff]
    %v1639 = vld [vmem:[%s4 + $0x68] sm:$0xff]
    %v1640 = vld [vmem:[%s4 + $0x70] sm:$0xff]
    %v1641 = vld [vmem:[%s4 + $0x78] sm:$0xff]
    %v1642 = vld [vmem:[%s5] sm:$0x1]
    %v1644 = vperm.slane %v1642, 0
    %1646 = vmatpush.msra.mxu0 %v1641
    %1647 = vmatpush.msra.mxu0 %v1640
    %1648 = vmatpush.msra.mxu0 %v1639
    %1649 = vmatpush.msra.mxu0 %v1638
    %1650 = vmatpush.msra.mxu0 %v1637
    %1651 = vmatpush.msra.mxu0 %v1636
    %1652 = vmatpush.msra.mxu0 %v1635
    %1653 = vmatpush.msra.mxu0 %v1634
    %1654 = vmatpush.msra.mxu0 %v1633
    %1655 = vmatpush.msra.mxu0 %v1632
    %1656 = vmatpush.msra.mxu0 %v1631
    %1657 = vmatpush.msra.mxu0 %v1630
    %1658 = vmatpush.msra.mxu0 %v1629
    %1659 = vmatpush.msra.mxu0 %v1628
    %1660 = vmatpush.msra.mxu0 %v1627
    %1661 = vmatpush.msra.mxu0 %v1626
    %1662 = vmatmul.f32.gmra.mxu0 %v1619
    %v1663 = vpop.f32.mrf.mxu0
    %v1664 = vadd.f32 %v1644, %v1663
    %1665 = vdwg.mxu0
    %1666 = vst [vmem:[%s6] sm:$0xff] %v1664
  $region33: #{sentiment_forward.1} parent=0 // pred_fallthru
    _
  // Predicated region
  $region34: #{sentiment_forward.1} parent=0 // pred_check
    _
  $region35: #{sentiment_forward.1} parent=0 // pred_check_branch
    %1668 = sbr.rel (0) target = $region37
  $region36: #{sentiment_forward.1} parent=0 // pred_region
    _
  $region37: #{sentiment_forward.1} parent=0 // pred_fallthru
    _
  // Predicated region
  $region38: #{sentiment_forward.1} parent=0 // pred_check
    _
  $region39: #{sentiment_forward.1} parent=0 // pred_check_branch
    %1670 = sbr.rel (0) target = $region41
  $region40: #{sentiment_forward.1} parent=0 // pred_region
    _
  $region41: #{sentiment_forward.1} parent=0 // pred_fallthru
    _

</llo_original>
